<compile_context>
chip_gen: v5e
topology: v5e:2x2
jax: 0.10.0
libtpu: 0.0.40
codegen_flags: <defaults>
</compile_context>

<pallas_src>
import functools

import jax
import jax.numpy as jnp
from jax import lax
from jax.experimental import pallas as pl
from jax.experimental.pallas import tpu as pltpu


_LEAKY_SLOPE = 0.2


def _leaky_relu(x, slope=_LEAKY_SLOPE):
    return jnp.where(x > 0, x, slope * x)


def _round_up(n, m):
    return ((n + m - 1) // m) * m


def _num_tensorcores():
    """#TensorCores a ('parallel',) grid axis shards over (v7x / megacore chips: 2)."""
    try:
        kind = jax.devices()[0].device_kind.lower()
    except Exception:
        return 1
    return 2 if any(t in kind for t in ("v7", "v4", "v5p")) else 1


def _vmem_budget_bytes():
    """~85% of per-core physical VMEM (headroom for compiler-internal scratch)."""
    cap = None
    try:
        cap = int(pltpu.get_tpu_info().vmem_capacity_bytes)
    except Exception:
        cap = None
    if not cap or cap <= 0:
        try:
            kind = jax.devices()[0].device_kind.lower()
        except Exception:
            kind = ""
        cap = (64 if "v7" in kind else 128) * 1024 * 1024
    return int(cap * 0.85)


def _single_buffered(shape, index_map):
    """Weights have constant index_maps -> DMA'd once; a 2nd pipeline buffer is VMEM waste."""
    try:
        return pl.BlockSpec(shape, index_map, pipeline_mode=pl.Buffered(1))
    except Exception:  # older jax without pipeline_mode support
        return pl.BlockSpec(shape, index_map)


# --------------------------------------------------------------------------------------
# Kernel bodies
# --------------------------------------------------------------------------------------

def _resident_kernel(x_ref, w_in_ref, *rest, n_mid):
    """Fused Linear->LeakyReLU chain, whole weight stack VMEM-resident.

    x_ref:     (tb, input_dim)
    w_in_ref:  (input_dim, hidden)
    w_mid_ref: (n_mid, hidden, hidden)   [present only when n_mid > 0]
    w_out_ref: (1, hidden)               final (hidden, 1) weight, pre-transposed to a row
    o_ref:     (1, tb)                   lane-dense output row for this batch tile
    """
    if n_mid > 0:
        w_mid_ref, w_out_ref, o_ref = rest
    else:
        w_out_ref, o_ref = rest
        w_mid_ref = None

    # First Linear on the MXU with f32 accumulation; LeakyReLU in f32 on the VPU.
    h = jnp.dot(x_ref[...], w_in_ref[...].astype(x_ref.dtype),
                preferred_element_type=jnp.float32)
    h = _leaky_relu(h)
    # Dropout(0.5) -> identity (eval-mode semantics).

    if n_mid > 0:
        mm_dtype = w_mid_ref.dtype
        if n_mid <= 4:
            # Short chains: static unroll keeps the whole chain visible to the scheduler.
            for i in range(n_mid):
                h = _leaky_relu(
                    jnp.dot(h.astype(mm_dtype), w_mid_ref[i],
                            preferred_element_type=jnp.float32))
        else:
            # Deep chains: fori_loop bounds vreg live ranges (avoids spill-bound unroll).
            def body(i, hh):
                return _leaky_relu(
                    jnp.dot(hh.astype(mm_dtype), w_mid_ref[i],
                            preferred_element_type=jnp.float32))
            h = lax.fori_loop(0, n_mid, body, h, unroll=2)

    # Final (hidden -> 1) projection on VPU + XLU (elementwise mul + lane reduce)
    # instead of an N=1 MXU pass.
    prod = h * w_out_ref[...].astype(jnp.float32)        # (tb, hidden) f32
    o_ref[0, :] = _leaky_relu(jnp.sum(prod, axis=-1)).astype(o_ref.dtype)


def _streamed_kernel(x_ref, w_in_ref, w_mid_ref, w_out_ref, o_ref, h_ref, *, n_mid):
    """Mid-layer-streamed variant: grid = (batch_tiles, n_mid).

    One (hidden, hidden) mid weight per grid step (auto double-buffered BlockSpec), the
    activation carried across steps in an f32 VMEM scratch.  Removes the hard VMEM
    ceiling on large (n_mid, hidden, hidden) stacks (v7x: 64 MiB/TC).
    """
    l = pl.program_id(1)

    @pl.when(l == 0)
    def _():
        h_ref[...] = _leaky_relu(
            jnp.dot(x_ref[...], w_in_ref[...].astype(x_ref.dtype),
                    preferred_element_type=jnp.float32))
        # Dropout(0.5) -> identity (eval-mode semantics).

    h_ref[...] = _leaky_relu(
        jnp.dot(h_ref[...].astype(w_mid_ref.dtype), w_mid_ref[0],
                preferred_element_type=jnp.float32))

    @pl.when(l == n_mid - 1)
    def _():
        prod = h_ref[...] * w_out_ref[...].astype(jnp.float32)
        o_ref[0, :] = _leaky_relu(jnp.sum(prod, axis=-1)).astype(o_ref.dtype)


# --------------------------------------------------------------------------------------
# Host-side wrapper
# --------------------------------------------------------------------------------------

def pathwayblock_forward(x, w_in_t, w_mid_t, w_out_t, *, block_b=None,
                         weights_dtype=None, force_stream=False):
    """x: (B, input_dim); w_in_t: (input_dim, hidden) (= nn.Linear weight .T);
    w_mid_t: (n_mid, hidden, hidden) with n_mid = layer_num - 1 (may have 0 rows, or None);
    w_out_t: (hidden, 1) (or (hidden,)/(1, hidden)). Returns (B, 1) in x.dtype."""
    out_dtype = x.dtype
    B, input_dim = x.shape
    hidden = w_in_t.shape[1]
    n_mid = 0 if w_mid_t is None else int(w_mid_t.shape[0])

    if weights_dtype is not None:
        # Cast ONLY the (once-fetched) weights: halves resident weight VMEM / enables bf16
        # MXU rate on the mid chain.  x is never re-cast here -- a wrapper-side cast of the
        # activations would be a separate un-hidden HBM pass on the kernel's bottleneck.
        w_in_t = w_in_t.astype(weights_dtype)
        if n_mid > 0:
            w_mid_t = w_mid_t.astype(weights_dtype)
        w_out_t = w_out_t.astype(weights_dtype)

    x_itemsize = jnp.dtype(x.dtype).itemsize
    w_itemsize = jnp.dtype(w_in_t.dtype).itemsize
    out_itemsize = jnp.dtype(out_dtype).itemsize

    w_in_bytes = input_dim * hidden * w_itemsize
    w_mid_bytes = n_mid * hidden * hidden * w_itemsize
    w_out_bytes = hidden * w_itemsize

    vmem_budget = _vmem_budget_bytes()
    slack = 2 * 1024 * 1024
    n_cores = _num_tensorcores()

    # Keep the whole mid-layer stack resident when it comfortably fits; otherwise stream it
    # one layer per grid step (the streamed layer is double-buffered: 2 * hidden^2 resident).
    stream_w_mid = n_mid > 0 and (
        force_stream
        or (w_in_bytes + w_mid_bytes + w_out_bytes) > (vmem_budget - slack) // 2)

    resident_w_bytes = w_in_bytes + w_out_bytes + (
        2 * hidden * hidden * w_itemsize if stream_w_mid else w_mid_bytes)

    # Batch tile: as big as the VMEM budget allows (amortizes ~0.35us/step and approaches
    # the HBM roofline), capped at 1024 and at a size that still gives every TensorCore work.
    if block_b is None:
        avail = vmem_budget - slack - resident_w_bytes
        per_row = (2 * input_dim * x_itemsize      # double-buffered x tile
                   + 4 * hidden * 4                # f32 activations / matmul temporaries
                   + 2 * out_itemsize)             # output tile
        max_rows = max(8, (int(avail) // max(per_row, 1)) // 8 * 8)
        target = min(1024, _round_up(pl.cdiv(B, n_cores), 8))
        block_b = max(8, min(target, max_rows))
    else:
        block_b = max(8, _round_up(int(block_b), 8))

    num_tiles = pl.cdiv(B, block_b)
    if num_tiles == 1:
        # Single tile: use the exact batch as the block (full-dim blocks are always legal),
        # so there is no padding and no out-of-range rows at all.
        block_b = B
    elif n_cores > 1 and num_tiles % n_cores:
        # Balance the tile count across TensorCores (v7x / megacore).
        nt_bal = _round_up(num_tiles, n_cores)
        block_b = max(8, _round_up(pl.cdiv(B, nt_bal), 8))
        num_tiles = pl.cdiv(B, block_b)

    # NOTE: no host-side jnp.pad of x.  When B % block_b != 0 the last (partial) block's
    # out-of-range rows are undefined on read; every output row depends only on its own
    # input row, so those rows are simply sliced away below (no contamination).

    w_out_row = jnp.reshape(w_out_t, (1, hidden))

    flops = 2 * B * (input_dim * hidden + n_mid * hidden * hidden + hidden)
    w_read_bytes = w_in_bytes + w_out_bytes + (
        num_tiles * w_mid_bytes if stream_w_mid else w_mid_bytes)
    cost = pl.CostEstimate(
        flops=int(flops), transcendentals=0,
        bytes_accessed=int(B * input_dim * x_itemsize + w_read_bytes + B * out_itemsize))

    out_shape = jax.ShapeDtypeStruct((num_tiles, block_b), out_dtype)

    if not stream_w_mid:
        in_specs = [
            pl.BlockSpec((block_b, input_dim), lambda i: (i, 0)),
            _single_buffered((input_dim, hidden), lambda i: (0, 0)),
        ]
        operands = [x, w_in_t]
        if n_mid > 0:
            in_specs.append(_single_buffered((n_mid, hidden, hidden), lambda i: (0, 0, 0)))
            operands.append(w_mid_t)
        in_specs.append(_single_buffered((1, hidden), lambda i: (0, 0)))
        operands.append(w_out_row)

        out_slab = pl.pallas_call(
            functools.partial(_resident_kernel, n_mid=n_mid),
            out_shape=out_shape,
            grid_spec=pltpu.PrefetchScalarGridSpec(
                num_scalar_prefetch=0,
                grid=(num_tiles,),
                in_specs=in_specs,
                out_specs=pl.BlockSpec((1, block_b), lambda i: (i, 0)),
            ),
            compiler_params=pltpu.CompilerParams(
                dimension_semantics=("parallel",),
                vmem_limit_bytes=vmem_budget,
            ),
            cost_estimate=cost,
        )(*operands)
    else:
        in_specs = [
            pl.BlockSpec((block_b, input_dim), lambda i, l: (i, 0)),
            _single_buffered((input_dim, hidden), lambda i, l: (0, 0)),
            # Streamed mid weights: one layer per step, auto double-buffered so the DMA of
            # layer l+1 hides behind layer l's matmul.
            pl.BlockSpec((1, hidden, hidden), lambda i, l: (l, 0, 0)),
            _single_buffered((1, hidden), lambda i, l: (0, 0)),
        ]
        operands = [x, w_in_t, w_mid_t, w_out_row]

        out_slab = pl.pallas_call(
            functools.partial(_streamed_kernel, n_mid=n_mid),
            out_shape=out_shape,
            grid_spec=pltpu.PrefetchScalarGridSpec(
                num_scalar_prefetch=0,
                grid=(num_tiles, n_mid),
                in_specs=in_specs,
                out_specs=pl.BlockSpec((1, block_b), lambda i, l: (i, 0)),
                scratch_shapes=[pltpu.VMEM((block_b, hidden), jnp.float32)],
            ),
            compiler_params=pltpu.CompilerParams(
                dimension_semantics=("parallel", "arbitrary"),
                vmem_limit_bytes=vmem_budget,
            ),
            cost_estimate=cost,
        )(*operands)

    return out_slab.reshape(num_tiles * block_b, 1)[:B]


def pathwayblock_reference(x, w_in_t, w_mid_t, w_out_t):
    h = _leaky_relu(x @ w_in_t)
    n_mid = 0 if w_mid_t is None else w_mid_t.shape[0]
    for i in range(n_mid):
        h = _leaky_relu(h @ w_mid_t[i])
    return _leaky_relu(h @ jnp.reshape(w_out_t, (-1, 1)))


if __name__ == "__main__":
    key = jax.random.PRNGKey(0)
    k1, k2, k3, k4, k5, k6, k7, k8, k9 = jax.random.split(key, 9)

    def check(name, out, ref, B):
        assert out.shape == (B, 1), f"{name}: bad shape {out.shape}"
        assert jnp.allclose(out, ref, atol=1e-3, rtol=1e-3), f"{name}: mismatch vs reference"

    # Case 1: layer_num = 2 (one hidden->hidden middle Linear), init_weights-style 0.01 fill.
    B1, in1, hid1, ln1 = 256, 512, 64, 2
    x1 = jax.random.normal(k1, (B1, in1), dtype=jnp.float32)
    w_in1 = jnp.full((in1, hid1), 0.01, dtype=jnp.float32)
    w_mid1 = jnp.full((ln1 - 1, hid1, hid1), 0.01, dtype=jnp.float32)
    w_out1 = jnp.full((hid1, 1), 0.01, dtype=jnp.float32)
    out1 = jax.block_until_ready(pathwayblock_forward(x1, w_in1, w_mid1, w_out1))
    check("case1", out1, pathwayblock_reference(x1, w_in1, w_mid1, w_out1), B1)

    # Case 2: layer_num = 1 (no middle Linears) with a ragged small batch (single exact tile).
    B2, in2, hid2 = 50, 384, 32
    x2 = jax.random.normal(k2, (B2, in2), dtype=jnp.float32)
    w_in2 = jnp.full((in2, hid2), 0.01, dtype=jnp.float32)
    w_mid2 = jnp.zeros((0, hid2, hid2), dtype=jnp.float32)
    w_out2 = jnp.full((hid2, 1), 0.01, dtype=jnp.float32)
    out2 = jax.block_until_ready(pathwayblock_forward(x2, w_in2, w_mid2, w_out2))
    check("case2", out2, pathwayblock_reference(x2, w_in2, w_mid2, w_out2), B2)

    # Case 3: deep chain (layer_num = 6 -> fori_loop path), random weights, forced small tile
    # so the grid is multi-tile with a ragged (partial) last block and no host-side pad.
    B3, in3, hid3, ln3 = 200, 256, 64, 6
    x3 = jax.random.normal(k3, (B3, in3), dtype=jnp.float32)
    w_in3 = 0.05 * jax.random.normal(k4, (in3, hid3), dtype=jnp.float32)
    w_mid3 = 0.05 * jax.random.normal(k5, (ln3 - 1, hid3, hid3), dtype=jnp.float32)
    w_out3 = 0.05 * jax.random.normal(k6, (hid3, 1), dtype=jnp.float32)
    out3 = jax.block_until_ready(
        pathwayblock_forward(x3, w_in3, w_mid3, w_out3, block_b=64))
    check("case3", out3, pathwayblock_reference(x3, w_in3, w_mid3, w_out3), B3)

    # Case 4: streamed mid-layer path (v7x-style fallback), exercised via force_stream=True.
    B4, in4, hid4, ln4 = 64, 128, 64, 4
    x4 = jax.random.normal(k7, (B4, in4), dtype=jnp.float32)
    w_in4 = 0.05 * jax.random.normal(k8, (in4, hid4), dtype=jnp.float32)
    w_mid4 = 0.05 * jax.random.normal(k9, (ln4 - 1, hid4, hid4), dtype=jnp.float32)
    w_out4 = jnp.full((hid4, 1), 0.01, dtype=jnp.float32)
    out4 = jax.block_until_ready(
        pathwayblock_forward(x4, w_in4, w_mid4, w_out4, force_stream=True))
    check("case4", out4, pathwayblock_reference(x4, w_in4, w_mid4, w_out4), B4)

    print("KERNEL_OK")
</pallas_src>

<mosaic_0001>
module attributes {stable_mosaic.version = 11 : i64} {
  func.func @_resident_kernel(%arg0: i32, %arg1: memref<256x512xf32, #tpu.memory_space<vmem>>, %arg2: memref<512x64xf32, #tpu.memory_space<vmem>>, %arg3: memref<1x64x64xf32, #tpu.memory_space<vmem>>, %arg4: memref<1x64xf32, #tpu.memory_space<vmem>>, %arg5: memref<1x256xf32, #tpu.memory_space<vmem>>) attributes {dimension_semantics = [#tpu.dimension_semantics<parallel>], iteration_bounds = array<i64: 1>, scalar_prefetch = 0 : i64, scratch_operands = 0 : i64, tpu.core_type = #tpu.core_type<tc>, window_params = [{transform_indices = @transform_0, window_bounds = array<i64: 256, 512>}, {pipeline_mode = #tpu.pipeline_mode<synchronous>, transform_indices = @transform_1, window_bounds = array<i64: 512, 64>}, {pipeline_mode = #tpu.pipeline_mode<synchronous>, transform_indices = @transform_2, window_bounds = array<i64: 1, 64, 64>}, {pipeline_mode = #tpu.pipeline_mode<synchronous>, transform_indices = @transform_3, window_bounds = array<i64: 1, 64>}, {transform_indices = @transform_4, window_bounds = array<i64: 1, 256>}]} {
    %c0 = arith.constant 0 : index
    %c0_0 = arith.constant 0 : index
    %0 = vector.load %arg1[%c0, %c0_0] : memref<256x512xf32, #tpu.memory_space<vmem>>, vector<256x512xf32>
    %c0_1 = arith.constant 0 : index
    %c0_2 = arith.constant 0 : index
    %1 = vector.load %arg2[%c0_1, %c0_2] : memref<512x64xf32, #tpu.memory_space<vmem>>, vector<512x64xf32>
    %cst = arith.constant dense<0.000000e+00> : vector<256x64xf32>
    %2 = tpu.matmul %0, %1, %cst {dimension_numbers = #tpu.dot_dimension_numbers<[1], [0], [0], [1], [0, 0, 1, 1], [], []>} : vector<256x512xf32>, vector<512x64xf32>, vector<256x64xf32> -> vector<256x64xf32>
    %cst_3 = arith.constant 0.000000e+00 : f32
    %3 = vector.broadcast %cst_3 : f32 to vector<256x64xf32>
    %4 = arith.cmpf ogt, %2, %3 : vector<256x64xf32>
    %cst_4 = arith.constant 2.000000e-01 : f32
    %5 = vector.broadcast %cst_4 : f32 to vector<256x64xf32>
    %6 = arith.mulf %5, %2 : vector<256x64xf32>
    %7 = arith.select %4, %2, %6 : vector<256x64xi1>, vector<256x64xf32>
    %c0_5 = arith.constant 0 : index
    %c0_6 = arith.constant 0 : index
    %c0_7 = arith.constant 0 : index
    %8 = vector.load %arg3[%c0_5, %c0_6, %c0_7] : memref<1x64x64xf32, #tpu.memory_space<vmem>>, vector<1x64x64xf32>
    %9 = vector.shape_cast %8 : vector<1x64x64xf32> to vector<64x64xf32>
    %cst_8 = arith.constant dense<0.000000e+00> : vector<256x64xf32>
    %10 = tpu.matmul %7, %9, %cst_8 {dimension_numbers = #tpu.dot_dimension_numbers<[1], [0], [0], [1], [0, 0, 1, 1], [], []>} : vector<256x64xf32>, vector<64x64xf32>, vector<256x64xf32> -> vector<256x64xf32>
    %cst_9 = arith.constant 0.000000e+00 : f32
    %11 = vector.broadcast %cst_9 : f32 to vector<256x64xf32>
    %12 = arith.cmpf ogt, %10, %11 : vector<256x64xf32>
    %cst_10 = arith.constant 2.000000e-01 : f32
    %13 = vector.broadcast %cst_10 : f32 to vector<256x64xf32>
    %14 = arith.mulf %13, %10 : vector<256x64xf32>
    %15 = arith.select %12, %10, %14 : vector<256x64xi1>, vector<256x64xf32>
    %c0_11 = arith.constant 0 : index
    %c0_12 = arith.constant 0 : index
    %16 = vector.load %arg4[%c0_11, %c0_12] : memref<1x64xf32, #tpu.memory_space<vmem>>, vector<1x64xf32>
    %17 = vector.broadcast %16 : vector<1x64xf32> to vector<256x64xf32>
    %18 = arith.mulf %15, %17 : vector<256x64xf32>
    %cst_13 = arith.constant dense<0.000000e+00> : vector<256xf32>
    %19 = vector.multi_reduction <add>, %18, %cst_13 [1] : vector<256x64xf32> to vector<256xf32>
    %cst_14 = arith.constant 0.000000e+00 : f32
    %20 = vector.broadcast %cst_14 : f32 to vector<256xf32>
    %21 = arith.cmpf ogt, %19, %20 : vector<256xf32>
    %cst_15 = arith.constant 2.000000e-01 : f32
    %22 = vector.broadcast %cst_15 : f32 to vector<256xf32>
    %23 = arith.mulf %22, %19 : vector<256xf32>
    %24 = arith.select %21, %19, %23 : vector<256xi1>, vector<256xf32>
    %c0_16 = arith.constant 0 : index
    %c0_17 = arith.constant 0 : index
    %25 = vector.load %arg5[%c0_16, %c0_17] : memref<1x256xf32, #tpu.memory_space<vmem>>, vector<1x256xf32>
    %26 = vector.shape_cast %25 : vector<1x256xf32> to vector<256xf32>
    %27 = vector.shape_cast %24 : vector<256xf32> to vector<1x256xf32>
    tpu.vector_store %arg5[%c0_16, %c0_17], %27 {strides = array<i32>} : memref<1x256xf32, #tpu.memory_space<vmem>>, vector<1x256xf32>,
    return
  }
  func.func @transform_0(%arg0: i32) -> (i32, i32) {
    %c0_i32 = arith.constant 0 : i32
    %c0_i32_0 = arith.constant 0 : i32
    return %arg0, %c0_i32 : i32, i32
  }
  func.func @transform_1(%arg0: i32) -> (i32, i32) {
    %c0_i32 = arith.constant 0 : i32
    %c0_i32_0 = arith.constant 0 : i32
    %c0_i32_1 = arith.constant 0 : i32
    return %c0_i32, %c0_i32_0 : i32, i32
  }
  func.func @transform_2(%arg0: i32) -> (i32, i32, i32) {
    %c0_i32 = arith.constant 0 : i32
    %c0_i32_0 = arith.constant 0 : i32
    %c0_i32_1 = arith.constant 0 : i32
    %c0_i32_2 = arith.constant 0 : i32
    return %c0_i32, %c0_i32_0, %c0_i32_1 : i32, i32, i32
  }
  func.func @transform_3(%arg0: i32) -> (i32, i32) {
    %c0_i32 = arith.constant 0 : i32
    %c0_i32_0 = arith.constant 0 : i32
    %c0_i32_1 = arith.constant 0 : i32
    return %c0_i32, %c0_i32_0 : i32, i32
  }
  func.func @transform_4(%arg0: i32) -> (i32, i32) {
    %c0_i32 = arith.constant 0 : i32
    %c0_i32_0 = arith.constant 0 : i32
    return %arg0, %c0_i32 : i32, i32
  }
}

</mosaic_0001>

<llo_original>
// kernel: tpu_custom_call.1
$region0: #{tpu_custom_call.1}
  #allocation0 [shape = 'u32[]', space=smem, size = 0x4, offset = 0x4, fixed_abs, tag = 'smem constant byte address 0x4 - core index']
  #allocation1 [shape = 'u32[72,128]{1,0:T(1,128)}', space=vmem, size = 0x9000, scoped, tag = 'internal scratch']
  %s0 = inlined_call_operand.hbm [shape: f32[256,512], index: 0, kind: input, shape index: {}]
  %s1 = inlined_call_operand.vmem [shape: f32[512,64], index: 1, kind: input, shape index: {}]
  %s2 = inlined_call_operand.vmem [shape: f32[1,64,64], index: 2, kind: input, shape index: {}]
  %s3 = inlined_call_operand.vmem [shape: f32[1,64], index: 3, kind: input, shape index: {}]
  %s4 = inlined_call_operand.hbm [shape: f32[1,256], index: 4, kind: output, shape index: {}]
  %s5 = sld [smem:[#allocation0]]
  $region30: #{tpu_custom_call.1} parent=0
    _
  %s7 = ssub.s32 1, %s5
  %s8 = scalar_select 0, %s7, %s5
  $region1: #{tpu_custom_call.1} parent=0
    #allocation2 [shape = 'u8[524288]{0}', space=vmem, size = 0x80000, scoped, tag = 'input window, operand 0, single buffered']
    #allocation3 [shape = 's32[1]{0}', space=sflag, size = 0x4, scoped, tag = 'scoped memory for tpu_custom_call.1']
    #allocation4 [shape = 's32[1]{0}', space=sflag, size = 0x4, scoped, tag = 'scoped memory for tpu_custom_call.1']
    #allocation5 [shape = 'u8[1024]{0}', space=vmem, size = 0x400, scoped, tag = 'output window, operand 0, single buffered']
    %9 = vsyncpa [#allocation3], 0
    %10 = vsyncpa [#allocation4], 0
    // Predicated region
    $region2: #{tpu_custom_call.1} parent=1 // pred_check
      _
    $region3: #{tpu_custom_call.1} parent=1 // pred_check_branch
      %12 = sbr.rel (0) target = $region5
    $region4: #{tpu_custom_call.1} parent=1 // pred_region
      %14 = vsyncadd [#allocation3], 0
      %s15 = sshll.u32 %s0, 4
      %s16 = int_to_ptr.hbm [resolvable:$true] %s15
      %s17 = sshll.u32 [#allocation2], 4
      %s18 = int_to_ptr.vmem [resolvable:$true] %s17
      %23 = dma.hbm_to_vmem [thread:$0]  %s16, 16384, %s18, [#allocation3], 512, 512, 32
    $region5: #{tpu_custom_call.1} parent=1 // pred_fallthru
      _
    // Predicated region
    $region6: #{tpu_custom_call.1} parent=1 // pred_check
      _
    $region7: #{tpu_custom_call.1} parent=1 // pred_check_branch
      %25 = sbr.rel (0) target = $region9
    $region8: #{tpu_custom_call.1} parent=1 // pred_region
      _
    $region9: #{tpu_custom_call.1} parent=1 // pred_fallthru
      _
    // Predicated region
    $region10: #{tpu_custom_call.1} parent=1 // pred_check
      _
    $region11: #{tpu_custom_call.1} parent=1 // pred_check_branch
      %27 = sbr.rel (0) target = $region13
    $region12: #{tpu_custom_call.1} parent=1 // pred_region
      _
    $region13: #{tpu_custom_call.1} parent=1 // pred_fallthru
      _
    // Predicated region
    $region14: #{tpu_custom_call.1} parent=1 // pred_check
      _
    $region15: #{tpu_custom_call.1} parent=1 // pred_check_branch
      %29 = sbr.rel (0) target = $region17
    $region16: #{tpu_custom_call.1} parent=1 // pred_region
      _
    $region17: #{tpu_custom_call.1} parent=1 // pred_fallthru
      _
    // Predicated region
    $region18: #{tpu_custom_call.1} parent=1 // pred_check
      _
    $region19: #{tpu_custom_call.1} parent=1 // pred_check_branch
      %31 = sbr.rel (0) target = $region21
    $region20: #{tpu_custom_call.1} parent=1 // pred_region
      %33 = dma.done [#allocation3], 16384
    $region21: #{tpu_custom_call.1} parent=1 // pred_fallthru
      _
    %v34 = vld [vmem:[#allocation2] sm:$0xff]
    %v35 = vld [vmem:[#allocation2 + $0x8] sm:$0xff]
    %v36 = vld [vmem:[#allocation2 + $0x10] sm:$0xff]
    %v37 = vld [vmem:[#allocation2 + $0x18] sm:$0xff]
    %v38 = vld [vmem:[#allocation2 + $0x20] sm:$0xff]
    %v39 = vld [vmem:[#allocation2 + $0x28] sm:$0xff]
    %v40 = vld [vmem:[#allocation2 + $0x30] sm:$0xff]
    %v41 = vld [vmem:[#allocation2 + $0x38] sm:$0xff]
    %v42 = vld [vmem:[#allocation2 + $0x40] sm:$0xff]
    %v43 = vld [vmem:[#allocation2 + $0x48] sm:$0xff]
    %v44 = vld [vmem:[#allocation2 + $0x50] sm:$0xff]
    %v45 = vld [vmem:[#allocation2 + $0x58] sm:$0xff]
    %v46 = vld [vmem:[#allocation2 + $0x60] sm:$0xff]
    %v47 = vld [vmem:[#allocation2 + $0x68] sm:$0xff]
    %v48 = vld [vmem:[#allocation2 + $0x70] sm:$0xff]
    %v49 = vld [vmem:[#allocation2 + $0x78] sm:$0xff]
    %v50 = vld [vmem:[#allocation2 + $0x80] sm:$0xff]
    %v51 = vld [vmem:[#allocation2 + $0x88] sm:$0xff]
    %v52 = vld [vmem:[#allocation2 + $0x90] sm:$0xff]
    %v53 = vld [vmem:[#allocation2 + $0x98] sm:$0xff]
    %v54 = vld [vmem:[#allocation2 + $0xa0] sm:$0xff]
    %v55 = vld [vmem:[#allocation2 + $0xa8] sm:$0xff]
    %v56 = vld [vmem:[#allocation2 + $0xb0] sm:$0xff]
    %v57 = vld [vmem:[#allocation2 + $0xb8] sm:$0xff]
    %v58 = vld [vmem:[#allocation2 + $0xc0] sm:$0xff]
    %v59 = vld [vmem:[#allocation2 + $0xc8] sm:$0xff]
    %v60 = vld [vmem:[#allocation2 + $0xd0] sm:$0xff]
    %v61 = vld [vmem:[#allocation2 + $0xd8] sm:$0xff]
    %v62 = vld [vmem:[#allocation2 + $0xe0] sm:$0xff]
    %v63 = vld [vmem:[#allocation2 + $0xe8] sm:$0xff]
    %v64 = vld [vmem:[#allocation2 + $0xf0] sm:$0xff]
    %v65 = vld [vmem:[#allocation2 + $0xf8] sm:$0xff]
    %v66 = vld [vmem:[#allocation2 + $0x100] sm:$0xff]
    %v67 = vld [vmem:[#allocation2 + $0x108] sm:$0xff]
    %v68 = vld [vmem:[#allocation2 + $0x110] sm:$0xff]
    %v69 = vld [vmem:[#allocation2 + $0x118] sm:$0xff]
    %v70 = vld [vmem:[#allocation2 + $0x120] sm:$0xff]
    %v71 = vld [vmem:[#allocation2 + $0x128] sm:$0xff]
    %v72 = vld [vmem:[#allocation2 + $0x130] sm:$0xff]
    %v73 = vld [vmem:[#allocation2 + $0x138] sm:$0xff]
    %v74 = vld [vmem:[#allocation2 + $0x140] sm:$0xff]
    %v75 = vld [vmem:[#allocation2 + $0x148] sm:$0xff]
    %v76 = vld [vmem:[#allocation2 + $0x150] sm:$0xff]
    %v77 = vld [vmem:[#allocation2 + $0x158] sm:$0xff]
    %v78 = vld [vmem:[#allocation2 + $0x160] sm:$0xff]
    %v79 = vld [vmem:[#allocation2 + $0x168] sm:$0xff]
    %v80 = vld [vmem:[#allocation2 + $0x170] sm:$0xff]
    %v81 = vld [vmem:[#allocation2 + $0x178] sm:$0xff]
    %v82 = vld [vmem:[#allocation2 + $0x180] sm:$0xff]
    %v83 = vld [vmem:[#allocation2 + $0x188] sm:$0xff]
    %v84 = vld [vmem:[#allocation2 + $0x190] sm:$0xff]
    %v85 = vld [vmem:[#allocation2 + $0x198] sm:$0xff]
    %v86 = vld [vmem:[#allocation2 + $0x1a0] sm:$0xff]
    %v87 = vld [vmem:[#allocation2 + $0x1a8] sm:$0xff]
    %v88 = vld [vmem:[#allocation2 + $0x1b0] sm:$0xff]
    %v89 = vld [vmem:[#allocation2 + $0x1b8] sm:$0xff]
    %v90 = vld [vmem:[#allocation2 + $0x1c0] sm:$0xff]
    %v91 = vld [vmem:[#allocation2 + $0x1c8] sm:$0xff]
    %v92 = vld [vmem:[#allocation2 + $0x1d0] sm:$0xff]
    %v93 = vld [vmem:[#allocation2 + $0x1d8] sm:$0xff]
    %v94 = vld [vmem:[#allocation2 + $0x1e0] sm:$0xff]
    %v95 = vld [vmem:[#allocation2 + $0x1e8] sm:$0xff]
    %v96 = vld [vmem:[#allocation2 + $0x1f0] sm:$0xff]
    %v97 = vld [vmem:[#allocation2 + $0x1f8] sm:$0xff]
    %v98 = vld [vmem:[#allocation2 + $0x200] sm:$0xff]
    %v99 = vld [vmem:[#allocation2 + $0x208] sm:$0xff]
    %v100 = vld [vmem:[#allocation2 + $0x210] sm:$0xff]
    %v101 = vld [vmem:[#allocation2 + $0x218] sm:$0xff]
    %v102 = vld [vmem:[#allocation2 + $0x220] sm:$0xff]
    %v103 = vld [vmem:[#allocation2 + $0x228] sm:$0xff]
    %v104 = vld [vmem:[#allocation2 + $0x230] sm:$0xff]
    %v105 = vld [vmem:[#allocation2 + $0x238] sm:$0xff]
    %v106 = vld [vmem:[#allocation2 + $0x240] sm:$0xff]
    %v107 = vld [vmem:[#allocation2 + $0x248] sm:$0xff]
    %v108 = vld [vmem:[#allocation2 + $0x250] sm:$0xff]
    %v109 = vld [vmem:[#allocation2 + $0x258] sm:$0xff]
    %v110 = vld [vmem:[#allocation2 + $0x260] sm:$0xff]
    %v111 = vld [vmem:[#allocation2 + $0x268] sm:$0xff]
    %v112 = vld [vmem:[#allocation2 + $0x270] sm:$0xff]
    %v113 = vld [vmem:[#allocation2 + $0x278] sm:$0xff]
    %v114 = vld [vmem:[#allocation2 + $0x280] sm:$0xff]
    %v115 = vld [vmem:[#allocation2 + $0x288] sm:$0xff]
    %v116 = vld [vmem:[#allocation2 + $0x290] sm:$0xff]
    %v117 = vld [vmem:[#allocation2 + $0x298] sm:$0xff]
    %v118 = vld [vmem:[#allocation2 + $0x2a0] sm:$0xff]
    %v119 = vld [vmem:[#allocation2 + $0x2a8] sm:$0xff]
    %v120 = vld [vmem:[#allocation2 + $0x2b0] sm:$0xff]
    %v121 = vld [vmem:[#allocation2 + $0x2b8] sm:$0xff]
    %v122 = vld [vmem:[#allocation2 + $0x2c0] sm:$0xff]
    %v123 = vld [vmem:[#allocation2 + $0x2c8] sm:$0xff]
    %v124 = vld [vmem:[#allocation2 + $0x2d0] sm:$0xff]
    %v125 = vld [vmem:[#allocation2 + $0x2d8] sm:$0xff]
    %v126 = vld [vmem:[#allocation2 + $0x2e0] sm:$0xff]
    %v127 = vld [vmem:[#allocation2 + $0x2e8] sm:$0xff]
    %v128 = vld [vmem:[#allocation2 + $0x2f0] sm:$0xff]
    %v129 = vld [vmem:[#allocation2 + $0x2f8] sm:$0xff]
    %v130 = vld [vmem:[#allocation2 + $0x300] sm:$0xff]
    %v131 = vld [vmem:[#allocation2 + $0x308] sm:$0xff]
    %v132 = vld [vmem:[#allocation2 + $0x310] sm:$0xff]
    %v133 = vld [vmem:[#allocation2 + $0x318] sm:$0xff]
    %v134 = vld [vmem:[#allocation2 + $0x320] sm:$0xff]
    %v135 = vld [vmem:[#allocation2 + $0x328] sm:$0xff]
    %v136 = vld [vmem:[#allocation2 + $0x330] sm:$0xff]
    %v137 = vld [vmem:[#allocation2 + $0x338] sm:$0xff]
    %v138 = vld [vmem:[#allocation2 + $0x340] sm:$0xff]
    %v139 = vld [vmem:[#allocation2 + $0x348] sm:$0xff]
    %v140 = vld [vmem:[#allocation2 + $0x350] sm:$0xff]
    %v141 = vld [vmem:[#allocation2 + $0x358] sm:$0xff]
    %v142 = vld [vmem:[#allocation2 + $0x360] sm:$0xff]
    %v143 = vld [vmem:[#allocation2 + $0x368] sm:$0xff]
    %v144 = vld [vmem:[#allocation2 + $0x370] sm:$0xff]
    %v145 = vld [vmem:[#allocation2 + $0x378] sm:$0xff]
    %v146 = vld [vmem:[#allocation2 + $0x380] sm:$0xff]
    %v147 = vld [vmem:[#allocation2 + $0x388] sm:$0xff]
    %v148 = vld [vmem:[#allocation2 + $0x390] sm:$0xff]
    %v149 = vld [vmem:[#allocation2 + $0x398] sm:$0xff]
    %v150 = vld [vmem:[#allocation2 + $0x3a0] sm:$0xff]
    %v151 = vld [vmem:[#allocation2 + $0x3a8] sm:$0xff]
    %v152 = vld [vmem:[#allocation2 + $0x3b0] sm:$0xff]
    %v153 = vld [vmem:[#allocation2 + $0x3b8] sm:$0xff]
    %v154 = vld [vmem:[#allocation2 + $0x3c0] sm:$0xff]
    %v155 = vld [vmem:[#allocation2 + $0x3c8] sm:$0xff]
    %v156 = vld [vmem:[#allocation2 + $0x3d0] sm:$0xff]
    %v157 = vld [vmem:[#allocation2 + $0x3d8] sm:$0xff]
    %v158 = vld [vmem:[#allocation2 + $0x3e0] sm:$0xff]
    %v159 = vld [vmem:[#allocation2 + $0x3e8] sm:$0xff]
    %v160 = vld [vmem:[#allocation2 + $0x3f0] sm:$0xff]
    %v161 = vld [vmem:[#allocation2 + $0x3f8] sm:$0xff]
    %v162 = vld [vmem:[%s1] sm:$0xff]
    %v163 = vld [vmem:[%s1 + $0x8] sm:$0xff]
    %v164 = vld [vmem:[%s1 + $0x10] sm:$0xff]
    %v165 = vld [vmem:[%s1 + $0x18] sm:$0xff]
    %v166 = vld [vmem:[%s1 + $0x20] sm:$0xff]
    %v167 = vld [vmem:[%s1 + $0x28] sm:$0xff]
    %v168 = vld [vmem:[%s1 + $0x30] sm:$0xff]
    %v169 = vld [vmem:[%s1 + $0x38] sm:$0xff]
    %v170 = vld [vmem:[%s1 + $0x40] sm:$0xff]
    %v171 = vld [vmem:[%s1 + $0x48] sm:$0xff]
    %v172 = vld [vmem:[%s1 + $0x50] sm:$0xff]
    %v173 = vld [vmem:[%s1 + $0x58] sm:$0xff]
    %v174 = vld [vmem:[%s1 + $0x60] sm:$0xff]
    %v175 = vld [vmem:[%s1 + $0x68] sm:$0xff]
    %v176 = vld [vmem:[%s1 + $0x70] sm:$0xff]
    %v177 = vld [vmem:[%s1 + $0x78] sm:$0xff]
    %v178 = vld [vmem:[%s1 + $0x80] sm:$0xff]
    %v179 = vld [vmem:[%s1 + $0x88] sm:$0xff]
    %v180 = vld [vmem:[%s1 + $0x90] sm:$0xff]
    %v181 = vld [vmem:[%s1 + $0x98] sm:$0xff]
    %v182 = vld [vmem:[%s1 + $0xa0] sm:$0xff]
    %v183 = vld [vmem:[%s1 + $0xa8] sm:$0xff]
    %v184 = vld [vmem:[%s1 + $0xb0] sm:$0xff]
    %v185 = vld [vmem:[%s1 + $0xb8] sm:$0xff]
    %v186 = vld [vmem:[%s1 + $0xc0] sm:$0xff]
    %v187 = vld [vmem:[%s1 + $0xc8] sm:$0xff]
    %v188 = vld [vmem:[%s1 + $0xd0] sm:$0xff]
    %v189 = vld [vmem:[%s1 + $0xd8] sm:$0xff]
    %v190 = vld [vmem:[%s1 + $0xe0] sm:$0xff]
    %v191 = vld [vmem:[%s1 + $0xe8] sm:$0xff]
    %v192 = vld [vmem:[%s1 + $0xf0] sm:$0xff]
    %v193 = vld [vmem:[%s1 + $0xf8] sm:$0xff]
    %v194 = vld [vmem:[%s1 + $0x100] sm:$0xff]
    %v195 = vld [vmem:[%s1 + $0x108] sm:$0xff]
    %v196 = vld [vmem:[%s1 + $0x110] sm:$0xff]
    %v197 = vld [vmem:[%s1 + $0x118] sm:$0xff]
    %v198 = vld [vmem:[%s1 + $0x120] sm:$0xff]
    %v199 = vld [vmem:[%s1 + $0x128] sm:$0xff]
    %v200 = vld [vmem:[%s1 + $0x130] sm:$0xff]
    %v201 = vld [vmem:[%s1 + $0x138] sm:$0xff]
    %v202 = vld [vmem:[%s1 + $0x140] sm:$0xff]
    %v203 = vld [vmem:[%s1 + $0x148] sm:$0xff]
    %v204 = vld [vmem:[%s1 + $0x150] sm:$0xff]
    %v205 = vld [vmem:[%s1 + $0x158] sm:$0xff]
    %v206 = vld [vmem:[%s1 + $0x160] sm:$0xff]
    %v207 = vld [vmem:[%s1 + $0x168] sm:$0xff]
    %v208 = vld [vmem:[%s1 + $0x170] sm:$0xff]
    %v209 = vld [vmem:[%s1 + $0x178] sm:$0xff]
    %v210 = vld [vmem:[%s1 + $0x180] sm:$0xff]
    %v211 = vld [vmem:[%s1 + $0x188] sm:$0xff]
    %v212 = vld [vmem:[%s1 + $0x190] sm:$0xff]
    %v213 = vld [vmem:[%s1 + $0x198] sm:$0xff]
    %v214 = vld [vmem:[%s1 + $0x1a0] sm:$0xff]
    %v215 = vld [vmem:[%s1 + $0x1a8] sm:$0xff]
    %v216 = vld [vmem:[%s1 + $0x1b0] sm:$0xff]
    %v217 = vld [vmem:[%s1 + $0x1b8] sm:$0xff]
    %v218 = vld [vmem:[%s1 + $0x1c0] sm:$0xff]
    %v219 = vld [vmem:[%s1 + $0x1c8] sm:$0xff]
    %v220 = vld [vmem:[%s1 + $0x1d0] sm:$0xff]
    %v221 = vld [vmem:[%s1 + $0x1d8] sm:$0xff]
    %v222 = vld [vmem:[%s1 + $0x1e0] sm:$0xff]
    %v223 = vld [vmem:[%s1 + $0x1e8] sm:$0xff]
    %v224 = vld [vmem:[%s1 + $0x1f0] sm:$0xff]
    %v225 = vld [vmem:[%s1 + $0x1f8] sm:$0xff]
    %226 = vmatpush.msra.mxu0 %v177
    %227 = vmatpush.msra.mxu0 %v176
    %228 = vmatpush.msra.mxu0 %v175
    %229 = vmatpush.msra.mxu0 %v174
    %230 = vmatpush.msra.mxu0 %v173
    %231 = vmatpush.msra.mxu0 %v172
    %232 = vmatpush.msra.mxu0 %v171
    %233 = vmatpush.msra.mxu0 %v170
    %234 = vmatpush.msra.mxu0 %v169
    %235 = vmatpush.msra.mxu0 %v168
    %236 = vmatpush.msra.mxu0 %v167
    %237 = vmatpush.msra.mxu0 %v166
    %238 = vmatpush.msra.mxu0 %v165
    %239 = vmatpush.msra.mxu0 %v164
    %240 = vmatpush.msra.mxu0 %v163
    %241 = vmatpush.msra.mxu0 %v162
    %242 = vmatmul.f32.gmra.mxu0 %v34
    %v243 = vpop.f32.mrf.mxu0
    %v244 = vadd.f32 0.0, %v243
    %245 = vmatmul.f32.gmra.mxu0 %v38
    %v246 = vpop.f32.mrf.mxu0
    %v247 = vadd.f32 0.0, %v246
    %248 = vmatmul.f32.gmra.mxu0 %v42
    %v249 = vpop.f32.mrf.mxu0
    %v250 = vadd.f32 0.0, %v249
    %251 = vmatmul.f32.gmra.mxu0 %v46
    %v252 = vpop.f32.mrf.mxu0
    %v253 = vadd.f32 0.0, %v252
    %254 = vmatmul.f32.gmra.mxu0 %v50
    %v255 = vpop.f32.mrf.mxu0
    %v256 = vadd.f32 0.0, %v255
    %257 = vmatmul.f32.gmra.mxu0 %v54
    %v258 = vpop.f32.mrf.mxu0
    %v259 = vadd.f32 0.0, %v258
    %260 = vmatmul.f32.gmra.mxu0 %v58
    %v261 = vpop.f32.mrf.mxu0
    %v262 = vadd.f32 0.0, %v261
    %263 = vmatmul.f32.gmra.mxu0 %v62
    %v264 = vpop.f32.mrf.mxu0
    %v265 = vadd.f32 0.0, %v264
    %266 = vmatmul.f32.gmra.mxu0 %v66
    %v267 = vpop.f32.mrf.mxu0
    %v268 = vadd.f32 0.0, %v267
    %269 = vmatmul.f32.gmra.mxu0 %v70
    %v270 = vpop.f32.mrf.mxu0
    %v271 = vadd.f32 0.0, %v270
    %272 = vmatmul.f32.gmra.mxu0 %v74
    %v273 = vpop.f32.mrf.mxu0
    %v274 = vadd.f32 0.0, %v273
    %275 = vmatmul.f32.gmra.mxu0 %v78
    %v276 = vpop.f32.mrf.mxu0
    %v277 = vadd.f32 0.0, %v276
    %278 = vmatmul.f32.gmra.mxu0 %v82
    %v279 = vpop.f32.mrf.mxu0
    %v280 = vadd.f32 0.0, %v279
    %281 = vmatmul.f32.gmra.mxu0 %v86
    %v282 = vpop.f32.mrf.mxu0
    %v283 = vadd.f32 0.0, %v282
    %284 = vmatmul.f32.gmra.mxu0 %v90
    %v285 = vpop.f32.mrf.mxu0
    %v286 = vadd.f32 0.0, %v285
    %287 = vmatmul.f32.gmra.mxu0 %v94
    %v288 = vpop.f32.mrf.mxu0
    %v289 = vadd.f32 0.0, %v288
    %290 = vmatmul.f32.gmra.mxu0 %v98
    %v291 = vpop.f32.mrf.mxu0
    %v292 = vadd.f32 0.0, %v291
    %293 = vmatmul.f32.gmra.mxu0 %v102
    %v294 = vpop.f32.mrf.mxu0
    %v295 = vadd.f32 0.0, %v294
    %296 = vmatmul.f32.gmra.mxu0 %v106
    %v297 = vpop.f32.mrf.mxu0
    %v298 = vadd.f32 0.0, %v297
    %299 = vmatmul.f32.gmra.mxu0 %v110
    %v300 = vpop.f32.mrf.mxu0
    %v301 = vadd.f32 0.0, %v300
    %302 = vmatmul.f32.gmra.mxu0 %v114
    %v303 = vpop.f32.mrf.mxu0
    %v304 = vadd.f32 0.0, %v303
    %305 = vmatmul.f32.gmra.mxu0 %v118
    %v306 = vpop.f32.mrf.mxu0
    %v307 = vadd.f32 0.0, %v306
    %308 = vmatmul.f32.gmra.mxu0 %v122
    %v309 = vpop.f32.mrf.mxu0
    %v310 = vadd.f32 0.0, %v309
    %311 = vmatmul.f32.gmra.mxu0 %v126
    %v312 = vpop.f32.mrf.mxu0
    %v313 = vadd.f32 0.0, %v312
    %314 = vmatmul.f32.gmra.mxu0 %v130
    %v315 = vpop.f32.mrf.mxu0
    %v316 = vadd.f32 0.0, %v315
    %317 = vmatmul.f32.gmra.mxu0 %v134
    %v318 = vpop.f32.mrf.mxu0
    %v319 = vadd.f32 0.0, %v318
    %320 = vmatmul.f32.gmra.mxu0 %v138
    %v321 = vpop.f32.mrf.mxu0
    %v322 = vadd.f32 0.0, %v321
    %323 = vmatmul.f32.gmra.mxu0 %v142
    %v324 = vpop.f32.mrf.mxu0
    %v325 = vadd.f32 0.0, %v324
    %326 = vmatmul.f32.gmra.mxu0 %v146
    %v327 = vpop.f32.mrf.mxu0
    %v328 = vadd.f32 0.0, %v327
    %329 = vmatmul.f32.gmra.mxu0 %v150
    %v330 = vpop.f32.mrf.mxu0
    %v331 = vadd.f32 0.0, %v330
    %332 = vmatmul.f32.gmra.mxu0 %v154
    %v333 = vpop.f32.mrf.mxu0
    %v334 = vadd.f32 0.0, %v333
    %335 = vmatmul.f32.gmra.mxu0 %v158
    %v336 = vpop.f32.mrf.mxu0
    %v337 = vadd.f32 0.0, %v336
    %338 = vdwg.mxu0
    %339 = vmatpush.msra.mxu0 %v193
    %340 = vmatpush.msra.mxu0 %v192
    %341 = vmatpush.msra.mxu0 %v191
    %342 = vmatpush.msra.mxu0 %v190
    %343 = vmatpush.msra.mxu0 %v189
    %344 = vmatpush.msra.mxu0 %v188
    %345 = vmatpush.msra.mxu0 %v187
    %346 = vmatpush.msra.mxu0 %v186
    %347 = vmatpush.msra.mxu0 %v185
    %348 = vmatpush.msra.mxu0 %v184
    %349 = vmatpush.msra.mxu0 %v183
    %350 = vmatpush.msra.mxu0 %v182
    %351 = vmatpush.msra.mxu0 %v181
    %352 = vmatpush.msra.mxu0 %v180
    %353 = vmatpush.msra.mxu0 %v179
    %354 = vmatpush.msra.mxu0 %v178
    %355 = vmatmul.f32.gmra.mxu0 %v35
    %v356 = vpop.f32.mrf.mxu0
    %v357 = vadd.f32 %v244, %v356
    %358 = vmatmul.f32.gmra.mxu0 %v39
    %v359 = vpop.f32.mrf.mxu0
    %v360 = vadd.f32 %v247, %v359
    %361 = vmatmul.f32.gmra.mxu0 %v43
    %v362 = vpop.f32.mrf.mxu0
    %v363 = vadd.f32 %v250, %v362
    %364 = vmatmul.f32.gmra.mxu0 %v47
    %v365 = vpop.f32.mrf.mxu0
    %v366 = vadd.f32 %v253, %v365
    %367 = vmatmul.f32.gmra.mxu0 %v51
    %v368 = vpop.f32.mrf.mxu0
    %v369 = vadd.f32 %v256, %v368
    %370 = vmatmul.f32.gmra.mxu0 %v55
    %v371 = vpop.f32.mrf.mxu0
    %v372 = vadd.f32 %v259, %v371
    %373 = vmatmul.f32.gmra.mxu0 %v59
    %v374 = vpop.f32.mrf.mxu0
    %v375 = vadd.f32 %v262, %v374
    %376 = vmatmul.f32.gmra.mxu0 %v63
    %v377 = vpop.f32.mrf.mxu0
    %v378 = vadd.f32 %v265, %v377
    %379 = vmatmul.f32.gmra.mxu0 %v67
    %v380 = vpop.f32.mrf.mxu0
    %v381 = vadd.f32 %v268, %v380
    %382 = vmatmul.f32.gmra.mxu0 %v71
    %v383 = vpop.f32.mrf.mxu0
    %v384 = vadd.f32 %v271, %v383
    %385 = vmatmul.f32.gmra.mxu0 %v75
    %v386 = vpop.f32.mrf.mxu0
    %v387 = vadd.f32 %v274, %v386
    %388 = vmatmul.f32.gmra.mxu0 %v79
    %v389 = vpop.f32.mrf.mxu0
    %v390 = vadd.f32 %v277, %v389
    %391 = vmatmul.f32.gmra.mxu0 %v83
    %v392 = vpop.f32.mrf.mxu0
    %v393 = vadd.f32 %v280, %v392
    %394 = vmatmul.f32.gmra.mxu0 %v87
    %v395 = vpop.f32.mrf.mxu0
    %v396 = vadd.f32 %v283, %v395
    %397 = vmatmul.f32.gmra.mxu0 %v91
    %v398 = vpop.f32.mrf.mxu0
    %v399 = vadd.f32 %v286, %v398
    %400 = vmatmul.f32.gmra.mxu0 %v95
    %v401 = vpop.f32.mrf.mxu0
    %v402 = vadd.f32 %v289, %v401
    %403 = vmatmul.f32.gmra.mxu0 %v99
    %v404 = vpop.f32.mrf.mxu0
    %v405 = vadd.f32 %v292, %v404
    %406 = vmatmul.f32.gmra.mxu0 %v103
    %v407 = vpop.f32.mrf.mxu0
    %v408 = vadd.f32 %v295, %v407
    %409 = vmatmul.f32.gmra.mxu0 %v107
    %v410 = vpop.f32.mrf.mxu0
    %v411 = vadd.f32 %v298, %v410
    %412 = vmatmul.f32.gmra.mxu0 %v111
    %v413 = vpop.f32.mrf.mxu0
    %v414 = vadd.f32 %v301, %v413
    %415 = vmatmul.f32.gmra.mxu0 %v115
    %v416 = vpop.f32.mrf.mxu0
    %v417 = vadd.f32 %v304, %v416
    %418 = vmatmul.f32.gmra.mxu0 %v119
    %v419 = vpop.f32.mrf.mxu0
    %v420 = vadd.f32 %v307, %v419
    %421 = vmatmul.f32.gmra.mxu0 %v123
    %v422 = vpop.f32.mrf.mxu0
    %v423 = vadd.f32 %v310, %v422
    %424 = vmatmul.f32.gmra.mxu0 %v127
    %v425 = vpop.f32.mrf.mxu0
    %v426 = vadd.f32 %v313, %v425
    %427 = vmatmul.f32.gmra.mxu0 %v131
    %v428 = vpop.f32.mrf.mxu0
    %v429 = vadd.f32 %v316, %v428
    %430 = vmatmul.f32.gmra.mxu0 %v135
    %v431 = vpop.f32.mrf.mxu0
    %v432 = vadd.f32 %v319, %v431
    %433 = vmatmul.f32.gmra.mxu0 %v139
    %v434 = vpop.f32.mrf.mxu0
    %v435 = vadd.f32 %v322, %v434
    %436 = vmatmul.f32.gmra.mxu0 %v143
    %v437 = vpop.f32.mrf.mxu0
    %v438 = vadd.f32 %v325, %v437
    %439 = vmatmul.f32.gmra.mxu0 %v147
    %v440 = vpop.f32.mrf.mxu0
    %v441 = vadd.f32 %v328, %v440
    %442 = vmatmul.f32.gmra.mxu0 %v151
    %v443 = vpop.f32.mrf.mxu0
    %v444 = vadd.f32 %v331, %v443
    %445 = vmatmul.f32.gmra.mxu0 %v155
    %v446 = vpop.f32.mrf.mxu0
    %v447 = vadd.f32 %v334, %v446
    %448 = vmatmul.f32.gmra.mxu0 %v159
    %v449 = vpop.f32.mrf.mxu0
    %v450 = vadd.f32 %v337, %v449
    %451 = vdwg.mxu0
    %452 = vmatpush.msra.mxu0 %v209
    %453 = vmatpush.msra.mxu0 %v208
    %454 = vmatpush.msra.mxu0 %v207
    %455 = vmatpush.msra.mxu0 %v206
    %456 = vmatpush.msra.mxu0 %v205
    %457 = vmatpush.msra.mxu0 %v204
    %458 = vmatpush.msra.mxu0 %v203
    %459 = vmatpush.msra.mxu0 %v202
    %460 = vmatpush.msra.mxu0 %v201
    %461 = vmatpush.msra.mxu0 %v200
    %462 = vmatpush.msra.mxu0 %v199
    %463 = vmatpush.msra.mxu0 %v198
    %464 = vmatpush.msra.mxu0 %v197
    %465 = vmatpush.msra.mxu0 %v196
    %466 = vmatpush.msra.mxu0 %v195
    %467 = vmatpush.msra.mxu0 %v194
    %468 = vmatmul.f32.gmra.mxu0 %v36
    %v469 = vpop.f32.mrf.mxu0
    %v470 = vadd.f32 %v357, %v469
    %471 = vmatmul.f32.gmra.mxu0 %v40
    %v472 = vpop.f32.mrf.mxu0
    %v473 = vadd.f32 %v360, %v472
    %474 = vmatmul.f32.gmra.mxu0 %v44
    %v475 = vpop.f32.mrf.mxu0
    %v476 = vadd.f32 %v363, %v475
    %477 = vmatmul.f32.gmra.mxu0 %v48
    %v478 = vpop.f32.mrf.mxu0
    %v479 = vadd.f32 %v366, %v478
    %480 = vmatmul.f32.gmra.mxu0 %v52
    %v481 = vpop.f32.mrf.mxu0
    %v482 = vadd.f32 %v369, %v481
    %483 = vmatmul.f32.gmra.mxu0 %v56
    %v484 = vpop.f32.mrf.mxu0
    %v485 = vadd.f32 %v372, %v484
    %486 = vmatmul.f32.gmra.mxu0 %v60
    %v487 = vpop.f32.mrf.mxu0
    %v488 = vadd.f32 %v375, %v487
    %489 = vmatmul.f32.gmra.mxu0 %v64
    %v490 = vpop.f32.mrf.mxu0
    %v491 = vadd.f32 %v378, %v490
    %492 = vmatmul.f32.gmra.mxu0 %v68
    %v493 = vpop.f32.mrf.mxu0
    %v494 = vadd.f32 %v381, %v493
    %495 = vmatmul.f32.gmra.mxu0 %v72
    %v496 = vpop.f32.mrf.mxu0
    %v497 = vadd.f32 %v384, %v496
    %498 = vmatmul.f32.gmra.mxu0 %v76
    %v499 = vpop.f32.mrf.mxu0
    %v500 = vadd.f32 %v387, %v499
    %501 = vmatmul.f32.gmra.mxu0 %v80
    %v502 = vpop.f32.mrf.mxu0
    %v503 = vadd.f32 %v390, %v502
    %504 = vmatmul.f32.gmra.mxu0 %v84
    %v505 = vpop.f32.mrf.mxu0
    %v506 = vadd.f32 %v393, %v505
    %507 = vmatmul.f32.gmra.mxu0 %v88
    %v508 = vpop.f32.mrf.mxu0
    %v509 = vadd.f32 %v396, %v508
    %510 = vmatmul.f32.gmra.mxu0 %v92
    %v511 = vpop.f32.mrf.mxu0
    %v512 = vadd.f32 %v399, %v511
    %513 = vmatmul.f32.gmra.mxu0 %v96
    %v514 = vpop.f32.mrf.mxu0
    %v515 = vadd.f32 %v402, %v514
    %516 = vmatmul.f32.gmra.mxu0 %v100
    %v517 = vpop.f32.mrf.mxu0
    %v518 = vadd.f32 %v405, %v517
    %519 = vmatmul.f32.gmra.mxu0 %v104
    %v520 = vpop.f32.mrf.mxu0
    %v521 = vadd.f32 %v408, %v520
    %522 = vmatmul.f32.gmra.mxu0 %v108
    %v523 = vpop.f32.mrf.mxu0
    %v524 = vadd.f32 %v411, %v523
    %525 = vmatmul.f32.gmra.mxu0 %v112
    %v526 = vpop.f32.mrf.mxu0
    %v527 = vadd.f32 %v414, %v526
    %528 = vmatmul.f32.gmra.mxu0 %v116
    %v529 = vpop.f32.mrf.mxu0
    %v530 = vadd.f32 %v417, %v529
    %531 = vmatmul.f32.gmra.mxu0 %v120
    %v532 = vpop.f32.mrf.mxu0
    %v533 = vadd.f32 %v420, %v532
    %534 = vmatmul.f32.gmra.mxu0 %v124
    %v535 = vpop.f32.mrf.mxu0
    %v536 = vadd.f32 %v423, %v535
    %537 = vmatmul.f32.gmra.mxu0 %v128
    %v538 = vpop.f32.mrf.mxu0
    %v539 = vadd.f32 %v426, %v538
    %540 = vmatmul.f32.gmra.mxu0 %v132
    %v541 = vpop.f32.mrf.mxu0
    %v542 = vadd.f32 %v429, %v541
    %543 = vmatmul.f32.gmra.mxu0 %v136
    %v544 = vpop.f32.mrf.mxu0
    %v545 = vadd.f32 %v432, %v544
    %546 = vmatmul.f32.gmra.mxu0 %v140
    %v547 = vpop.f32.mrf.mxu0
    %v548 = vadd.f32 %v435, %v547
    %549 = vmatmul.f32.gmra.mxu0 %v144
    %v550 = vpop.f32.mrf.mxu0
    %v551 = vadd.f32 %v438, %v550
    %552 = vmatmul.f32.gmra.mxu0 %v148
    %v553 = vpop.f32.mrf.mxu0
    %v554 = vadd.f32 %v441, %v553
    %555 = vmatmul.f32.gmra.mxu0 %v152
    %v556 = vpop.f32.mrf.mxu0
    %v557 = vadd.f32 %v444, %v556
    %558 = vmatmul.f32.gmra.mxu0 %v156
    %v559 = vpop.f32.mrf.mxu0
    %v560 = vadd.f32 %v447, %v559
    %561 = vmatmul.f32.gmra.mxu0 %v160
    %v562 = vpop.f32.mrf.mxu0
    %v563 = vadd.f32 %v450, %v562
    %564 = vdwg.mxu0
    %565 = vmatpush.msra.mxu0 %v225
    %566 = vmatpush.msra.mxu0 %v224
    %567 = vmatpush.msra.mxu0 %v223
    %568 = vmatpush.msra.mxu0 %v222
    %569 = vmatpush.msra.mxu0 %v221
    %570 = vmatpush.msra.mxu0 %v220
    %571 = vmatpush.msra.mxu0 %v219
    %572 = vmatpush.msra.mxu0 %v218
    %573 = vmatpush.msra.mxu0 %v217
    %574 = vmatpush.msra.mxu0 %v216
    %575 = vmatpush.msra.mxu0 %v215
    %576 = vmatpush.msra.mxu0 %v214
    %577 = vmatpush.msra.mxu0 %v213
    %578 = vmatpush.msra.mxu0 %v212
    %579 = vmatpush.msra.mxu0 %v211
    %580 = vmatpush.msra.mxu0 %v210
    %581 = vmatmul.f32.gmra.mxu0 %v37
    %v582 = vpop.f32.mrf.mxu0
    %v583 = vadd.f32 %v470, %v582
    %584 = vmatmul.f32.gmra.mxu0 %v41
    %v585 = vpop.f32.mrf.mxu0
    %v586 = vadd.f32 %v473, %v585
    %587 = vmatmul.f32.gmra.mxu0 %v45
    %v588 = vpop.f32.mrf.mxu0
    %v589 = vadd.f32 %v476, %v588
    %590 = vmatmul.f32.gmra.mxu0 %v49
    %v591 = vpop.f32.mrf.mxu0
    %v592 = vadd.f32 %v479, %v591
    %593 = vmatmul.f32.gmra.mxu0 %v53
    %v594 = vpop.f32.mrf.mxu0
    %v595 = vadd.f32 %v482, %v594
    %596 = vmatmul.f32.gmra.mxu0 %v57
    %v597 = vpop.f32.mrf.mxu0
    %v598 = vadd.f32 %v485, %v597
    %599 = vmatmul.f32.gmra.mxu0 %v61
    %v600 = vpop.f32.mrf.mxu0
    %v601 = vadd.f32 %v488, %v600
    %602 = vmatmul.f32.gmra.mxu0 %v65
    %v603 = vpop.f32.mrf.mxu0
    %v604 = vadd.f32 %v491, %v603
    %605 = vmatmul.f32.gmra.mxu0 %v69
    %v606 = vpop.f32.mrf.mxu0
    %v607 = vadd.f32 %v494, %v606
    %608 = vmatmul.f32.gmra.mxu0 %v73
    %v609 = vpop.f32.mrf.mxu0
    %v610 = vadd.f32 %v497, %v609
    %611 = vmatmul.f32.gmra.mxu0 %v77
    %v612 = vpop.f32.mrf.mxu0
    %v613 = vadd.f32 %v500, %v612
    %614 = vmatmul.f32.gmra.mxu0 %v81
    %v615 = vpop.f32.mrf.mxu0
    %v616 = vadd.f32 %v503, %v615
    %617 = vmatmul.f32.gmra.mxu0 %v85
    %v618 = vpop.f32.mrf.mxu0
    %v619 = vadd.f32 %v506, %v618
    %620 = vmatmul.f32.gmra.mxu0 %v89
    %v621 = vpop.f32.mrf.mxu0
    %v622 = vadd.f32 %v509, %v621
    %623 = vmatmul.f32.gmra.mxu0 %v93
    %v624 = vpop.f32.mrf.mxu0
    %v625 = vadd.f32 %v512, %v624
    %626 = vmatmul.f32.gmra.mxu0 %v97
    %v627 = vpop.f32.mrf.mxu0
    %v628 = vadd.f32 %v515, %v627
    %629 = vmatmul.f32.gmra.mxu0 %v101
    %v630 = vpop.f32.mrf.mxu0
    %v631 = vadd.f32 %v518, %v630
    %632 = vmatmul.f32.gmra.mxu0 %v105
    %v633 = vpop.f32.mrf.mxu0
    %v634 = vadd.f32 %v521, %v633
    %635 = vmatmul.f32.gmra.mxu0 %v109
    %v636 = vpop.f32.mrf.mxu0
    %v637 = vadd.f32 %v524, %v636
    %638 = vmatmul.f32.gmra.mxu0 %v113
    %v639 = vpop.f32.mrf.mxu0
    %v640 = vadd.f32 %v527, %v639
    %641 = vmatmul.f32.gmra.mxu0 %v117
    %v642 = vpop.f32.mrf.mxu0
    %v643 = vadd.f32 %v530, %v642
    %644 = vmatmul.f32.gmra.mxu0 %v121
    %v645 = vpop.f32.mrf.mxu0
    %v646 = vadd.f32 %v533, %v645
    %647 = vmatmul.f32.gmra.mxu0 %v125
    %v648 = vpop.f32.mrf.mxu0
    %v649 = vadd.f32 %v536, %v648
    %650 = vmatmul.f32.gmra.mxu0 %v129
    %v651 = vpop.f32.mrf.mxu0
    %v652 = vadd.f32 %v539, %v651
    %653 = vmatmul.f32.gmra.mxu0 %v133
    %v654 = vpop.f32.mrf.mxu0
    %v655 = vadd.f32 %v542, %v654
    %656 = vmatmul.f32.gmra.mxu0 %v137
    %v657 = vpop.f32.mrf.mxu0
    %v658 = vadd.f32 %v545, %v657
    %659 = vmatmul.f32.gmra.mxu0 %v141
    %v660 = vpop.f32.mrf.mxu0
    %v661 = vadd.f32 %v548, %v660
    %662 = vmatmul.f32.gmra.mxu0 %v145
    %v663 = vpop.f32.mrf.mxu0
    %v664 = vadd.f32 %v551, %v663
    %665 = vmatmul.f32.gmra.mxu0 %v149
    %v666 = vpop.f32.mrf.mxu0
    %v667 = vadd.f32 %v554, %v666
    %668 = vmatmul.f32.gmra.mxu0 %v153
    %v669 = vpop.f32.mrf.mxu0
    %v670 = vadd.f32 %v557, %v669
    %671 = vmatmul.f32.gmra.mxu0 %v157
    %v672 = vpop.f32.mrf.mxu0
    %v673 = vadd.f32 %v560, %v672
    %674 = vmatmul.f32.gmra.mxu0 %v161
    %v675 = vpop.f32.mrf.mxu0
    %v676 = vadd.f32 %v563, %v675
    %677 = vdwg.mxu0
    %vm678 = vcmp.gt.f32.partialorder %v583, 0.0
    %vm679 = vcmp.gt.f32.partialorder %v586, 0.0
    %vm680 = vcmp.gt.f32.partialorder %v589, 0.0
    %vm681 = vcmp.gt.f32.partialorder %v592, 0.0
    %vm682 = vcmp.gt.f32.partialorder %v595, 0.0
    %vm683 = vcmp.gt.f32.partialorder %v598, 0.0
    %vm684 = vcmp.gt.f32.partialorder %v601, 0.0
    %vm685 = vcmp.gt.f32.partialorder %v604, 0.0
    %vm686 = vcmp.gt.f32.partialorder %v607, 0.0
    %vm687 = vcmp.gt.f32.partialorder %v610, 0.0
    %vm688 = vcmp.gt.f32.partialorder %v613, 0.0
    %vm689 = vcmp.gt.f32.partialorder %v616, 0.0
    %vm690 = vcmp.gt.f32.partialorder %v619, 0.0
    %vm691 = vcmp.gt.f32.partialorder %v622, 0.0
    %vm692 = vcmp.gt.f32.partialorder %v625, 0.0
    %vm693 = vcmp.gt.f32.partialorder %v628, 0.0
    %vm694 = vcmp.gt.f32.partialorder %v631, 0.0
    %vm695 = vcmp.gt.f32.partialorder %v634, 0.0
    %vm696 = vcmp.gt.f32.partialorder %v637, 0.0
    %vm697 = vcmp.gt.f32.partialorder %v640, 0.0
    %vm698 = vcmp.gt.f32.partialorder %v643, 0.0
    %vm699 = vcmp.gt.f32.partialorder %v646, 0.0
    %vm700 = vcmp.gt.f32.partialorder %v649, 0.0
    %vm701 = vcmp.gt.f32.partialorder %v652, 0.0
    %vm702 = vcmp.gt.f32.partialorder %v655, 0.0
    %vm703 = vcmp.gt.f32.partialorder %v658, 0.0
    %vm704 = vcmp.gt.f32.partialorder %v661, 0.0
    %vm705 = vcmp.gt.f32.partialorder %v664, 0.0
    %vm706 = vcmp.gt.f32.partialorder %v667, 0.0
    %vm707 = vcmp.gt.f32.partialorder %v670, 0.0
    %vm708 = vcmp.gt.f32.partialorder %v673, 0.0
    %vm709 = vcmp.gt.f32.partialorder %v676, 0.0
    %v710 = vmul.f32 %v583, 0.2
    %v711 = vmul.f32 %v586, 0.2
    %v712 = vmul.f32 %v589, 0.2
    %v713 = vmul.f32 %v592, 0.2
    %v714 = vmul.f32 %v595, 0.2
    %v715 = vmul.f32 %v598, 0.2
    %v716 = vmul.f32 %v601, 0.2
    %v717 = vmul.f32 %v604, 0.2
    %v718 = vmul.f32 %v607, 0.2
    %v719 = vmul.f32 %v610, 0.2
    %v720 = vmul.f32 %v613, 0.2
    %v721 = vmul.f32 %v616, 0.2
    %v722 = vmul.f32 %v619, 0.2
    %v723 = vmul.f32 %v622, 0.2
    %v724 = vmul.f32 %v625, 0.2
    %v725 = vmul.f32 %v628, 0.2
    %v726 = vmul.f32 %v631, 0.2
    %v727 = vmul.f32 %v634, 0.2
    %v728 = vmul.f32 %v637, 0.2
    %v729 = vmul.f32 %v640, 0.2
    %v730 = vmul.f32 %v643, 0.2
    %v731 = vmul.f32 %v646, 0.2
    %v732 = vmul.f32 %v649, 0.2
    %v733 = vmul.f32 %v652, 0.2
    %v734 = vmul.f32 %v655, 0.2
    %v735 = vmul.f32 %v658, 0.2
    %v736 = vmul.f32 %v661, 0.2
    %v737 = vmul.f32 %v664, 0.2
    %v738 = vmul.f32 %v667, 0.2
    %v739 = vmul.f32 %v670, 0.2
    %v740 = vmul.f32 %v673, 0.2
    %v741 = vmul.f32 %v676, 0.2
    %v742 = vsel %vm678, %v583, %v710
    %v743 = vsel %vm679, %v586, %v711
    %v744 = vsel %vm680, %v589, %v712
    %v745 = vsel %vm681, %v592, %v713
    %v746 = vsel %vm682, %v595, %v714
    %v747 = vsel %vm683, %v598, %v715
    %v748 = vsel %vm684, %v601, %v716
    %v749 = vsel %vm685, %v604, %v717
    %v750 = vsel %vm686, %v607, %v718
    %v751 = vsel %vm687, %v610, %v719
    %v752 = vsel %vm688, %v613, %v720
    %v753 = vsel %vm689, %v616, %v721
    %v754 = vsel %vm690, %v619, %v722
    %v755 = vsel %vm691, %v622, %v723
    %v756 = vsel %vm692, %v625, %v724
    %v757 = vsel %vm693, %v628, %v725
    %v758 = vsel %vm694, %v631, %v726
    %v759 = vsel %vm695, %v634, %v727
    %v760 = vsel %vm696, %v637, %v728
    %v761 = vsel %vm697, %v640, %v729
    %v762 = vsel %vm698, %v643, %v730
    %v763 = vsel %vm699, %v646, %v731
    %v764 = vsel %vm700, %v649, %v732
    %v765 = vsel %vm701, %v652, %v733
    %v766 = vsel %vm702, %v655, %v734
    %v767 = vsel %vm703, %v658, %v735
    %v768 = vsel %vm704, %v661, %v736
    %v769 = vsel %vm705, %v664, %v737
    %v770 = vsel %vm706, %v667, %v738
    %v771 = vsel %vm707, %v670, %v739
    %v772 = vsel %vm708, %v673, %v740
    %v773 = vsel %vm709, %v676, %v741
    %v774 = vld [vmem:[%s2] sm:$0xff]
    %v775 = vld [vmem:[%s2 + $0x8] sm:$0xff]
    %v776 = vld [vmem:[%s2 + $0x10] sm:$0xff]
    %v777 = vld [vmem:[%s2 + $0x18] sm:$0xff]
    %v778 = vld [vmem:[%s2 + $0x20] sm:$0xff]
    %v779 = vld [vmem:[%s2 + $0x28] sm:$0xff]
    %v780 = vld [vmem:[%s2 + $0x30] sm:$0xff]
    %v781 = vld [vmem:[%s2 + $0x38] sm:$0xff]
    %vm782 = vcmask 523264
    %v784 = vsel %vm782, %v742, 0
    %v787 = vsel %vm782, %v743, 0
    %v790 = vsel %vm782, %v744, 0
    %v793 = vsel %vm782, %v745, 0
    %v796 = vsel %vm782, %v746, 0
    %v799 = vsel %vm782, %v747, 0
    %v802 = vsel %vm782, %v748, 0
    %v805 = vsel %vm782, %v749, 0
    %v808 = vsel %vm782, %v750, 0
    %v811 = vsel %vm782, %v751, 0
    %v814 = vsel %vm782, %v752, 0
    %v817 = vsel %vm782, %v753, 0
    %v820 = vsel %vm782, %v754, 0
    %v823 = vsel %vm782, %v755, 0
    %v826 = vsel %vm782, %v756, 0
    %v829 = vsel %vm782, %v757, 0
    %v832 = vsel %vm782, %v758, 0
    %v835 = vsel %vm782, %v759, 0
    %v838 = vsel %vm782, %v760, 0
    %v841 = vsel %vm782, %v761, 0
    %v844 = vsel %vm782, %v762, 0
    %v847 = vsel %vm782, %v763, 0
    %v850 = vsel %vm782, %v764, 0
    %v853 = vsel %vm782, %v765, 0
    %v856 = vsel %vm782, %v766, 0
    %v859 = vsel %vm782, %v767, 0
    %v862 = vsel %vm782, %v768, 0
    %v865 = vsel %vm782, %v769, 0
    %v868 = vsel %vm782, %v770, 0
    %v871 = vsel %vm782, %v771, 0
    %v874 = vsel %vm782, %v772, 0
    %v877 = vsel %vm782, %v773, 0
    %879 = vmatpush.msra.mxu0 0.0
    %880 = vmatpush.msra.mxu0 0.0
    %881 = vmatpush.msra.mxu0 0.0
    %882 = vmatpush.msra.mxu0 0.0
    %883 = vmatpush.msra.mxu0 0.0
    %884 = vmatpush.msra.mxu0 0.0
    %885 = vmatpush.msra.mxu0 0.0
    %886 = vmatpush.msra.mxu0 0.0
    %887 = vmatpush.msra.mxu0 %v781
    %888 = vmatpush.msra.mxu0 %v780
    %889 = vmatpush.msra.mxu0 %v779
    %890 = vmatpush.msra.mxu0 %v778
    %891 = vmatpush.msra.mxu0 %v777
    %892 = vmatpush.msra.mxu0 %v776
    %893 = vmatpush.msra.mxu0 %v775
    %894 = vmatpush.msra.mxu0 %v774
    %895 = vmatmul.f32.gmra.mxu0 %v784
    %v896 = vpop.f32.mrf.mxu0
    %v897 = vadd.f32 0.0, %v896
    %898 = vmatmul.f32.gmra.mxu0 %v787
    %v899 = vpop.f32.mrf.mxu0
    %v900 = vadd.f32 0.0, %v899
    %901 = vmatmul.f32.gmra.mxu0 %v790
    %v902 = vpop.f32.mrf.mxu0
    %v903 = vadd.f32 0.0, %v902
    %904 = vmatmul.f32.gmra.mxu0 %v793
    %v905 = vpop.f32.mrf.mxu0
    %v906 = vadd.f32 0.0, %v905
    %907 = vmatmul.f32.gmra.mxu0 %v796
    %v908 = vpop.f32.mrf.mxu0
    %v909 = vadd.f32 0.0, %v908
    %910 = vmatmul.f32.gmra.mxu0 %v799
    %v911 = vpop.f32.mrf.mxu0
    %v912 = vadd.f32 0.0, %v911
    %913 = vmatmul.f32.gmra.mxu0 %v802
    %v914 = vpop.f32.mrf.mxu0
    %v915 = vadd.f32 0.0, %v914
    %916 = vmatmul.f32.gmra.mxu0 %v805
    %v917 = vpop.f32.mrf.mxu0
    %v918 = vadd.f32 0.0, %v917
    %919 = vmatmul.f32.gmra.mxu0 %v808
    %v920 = vpop.f32.mrf.mxu0
    %v921 = vadd.f32 0.0, %v920
    %922 = vmatmul.f32.gmra.mxu0 %v811
    %v923 = vpop.f32.mrf.mxu0
    %v924 = vadd.f32 0.0, %v923
    %925 = vmatmul.f32.gmra.mxu0 %v814
    %v926 = vpop.f32.mrf.mxu0
    %v927 = vadd.f32 0.0, %v926
    %928 = vmatmul.f32.gmra.mxu0 %v817
    %v929 = vpop.f32.mrf.mxu0
    %v930 = vadd.f32 0.0, %v929
    %931 = vmatmul.f32.gmra.mxu0 %v820
    %v932 = vpop.f32.mrf.mxu0
    %v933 = vadd.f32 0.0, %v932
    %934 = vmatmul.f32.gmra.mxu0 %v823
    %v935 = vpop.f32.mrf.mxu0
    %v936 = vadd.f32 0.0, %v935
    %937 = vmatmul.f32.gmra.mxu0 %v826
    %v938 = vpop.f32.mrf.mxu0
    %v939 = vadd.f32 0.0, %v938
    %940 = vmatmul.f32.gmra.mxu0 %v829
    %v941 = vpop.f32.mrf.mxu0
    %v942 = vadd.f32 0.0, %v941
    %943 = vmatmul.f32.gmra.mxu0 %v832
    %v944 = vpop.f32.mrf.mxu0
    %v945 = vadd.f32 0.0, %v944
    %946 = vmatmul.f32.gmra.mxu0 %v835
    %v947 = vpop.f32.mrf.mxu0
    %v948 = vadd.f32 0.0, %v947
    %949 = vmatmul.f32.gmra.mxu0 %v838
    %v950 = vpop.f32.mrf.mxu0
    %v951 = vadd.f32 0.0, %v950
    %952 = vmatmul.f32.gmra.mxu0 %v841
    %v953 = vpop.f32.mrf.mxu0
    %v954 = vadd.f32 0.0, %v953
    %955 = vmatmul.f32.gmra.mxu0 %v844
    %v956 = vpop.f32.mrf.mxu0
    %v957 = vadd.f32 0.0, %v956
    %958 = vmatmul.f32.gmra.mxu0 %v847
    %v959 = vpop.f32.mrf.mxu0
    %v960 = vadd.f32 0.0, %v959
    %961 = vmatmul.f32.gmra.mxu0 %v850
    %v962 = vpop.f32.mrf.mxu0
    %v963 = vadd.f32 0.0, %v962
    %964 = vmatmul.f32.gmra.mxu0 %v853
    %v965 = vpop.f32.mrf.mxu0
    %v966 = vadd.f32 0.0, %v965
    %967 = vmatmul.f32.gmra.mxu0 %v856
    %v968 = vpop.f32.mrf.mxu0
    %v969 = vadd.f32 0.0, %v968
    %970 = vmatmul.f32.gmra.mxu0 %v859
    %v971 = vpop.f32.mrf.mxu0
    %v972 = vadd.f32 0.0, %v971
    %973 = vmatmul.f32.gmra.mxu0 %v862
    %v974 = vpop.f32.mrf.mxu0
    %v975 = vadd.f32 0.0, %v974
    %976 = vmatmul.f32.gmra.mxu0 %v865
    %v977 = vpop.f32.mrf.mxu0
    %v978 = vadd.f32 0.0, %v977
    %979 = vmatmul.f32.gmra.mxu0 %v868
    %v980 = vpop.f32.mrf.mxu0
    %v981 = vadd.f32 0.0, %v980
    %982 = vmatmul.f32.gmra.mxu0 %v871
    %v983 = vpop.f32.mrf.mxu0
    %v984 = vadd.f32 0.0, %v983
    %985 = vmatmul.f32.gmra.mxu0 %v874
    %v986 = vpop.f32.mrf.mxu0
    %v987 = vadd.f32 0.0, %v986
    %988 = vmatmul.f32.gmra.mxu0 %v877
    %v989 = vpop.f32.mrf.mxu0
    %v990 = vadd.f32 0.0, %v989
    %991 = vdwg.mxu0
    %vm992 = vcmp.gt.f32.partialorder %v897, 0.0
    %vm993 = vcmp.gt.f32.partialorder %v900, 0.0
    %vm994 = vcmp.gt.f32.partialorder %v903, 0.0
    %vm995 = vcmp.gt.f32.partialorder %v906, 0.0
    %vm996 = vcmp.gt.f32.partialorder %v909, 0.0
    %vm997 = vcmp.gt.f32.partialorder %v912, 0.0
    %vm998 = vcmp.gt.f32.partialorder %v915, 0.0
    %vm999 = vcmp.gt.f32.partialorder %v918, 0.0
    %vm1000 = vcmp.gt.f32.partialorder %v921, 0.0
    %vm1001 = vcmp.gt.f32.partialorder %v924, 0.0
    %vm1002 = vcmp.gt.f32.partialorder %v927, 0.0
    %vm1003 = vcmp.gt.f32.partialorder %v930, 0.0
    %vm1004 = vcmp.gt.f32.partialorder %v933, 0.0
    %vm1005 = vcmp.gt.f32.partialorder %v936, 0.0
    %vm1006 = vcmp.gt.f32.partialorder %v939, 0.0
    %vm1007 = vcmp.gt.f32.partialorder %v942, 0.0
    %vm1008 = vcmp.gt.f32.partialorder %v945, 0.0
    %vm1009 = vcmp.gt.f32.partialorder %v948, 0.0
    %vm1010 = vcmp.gt.f32.partialorder %v951, 0.0
    %vm1011 = vcmp.gt.f32.partialorder %v954, 0.0
    %vm1012 = vcmp.gt.f32.partialorder %v957, 0.0
    %vm1013 = vcmp.gt.f32.partialorder %v960, 0.0
    %vm1014 = vcmp.gt.f32.partialorder %v963, 0.0
    %vm1015 = vcmp.gt.f32.partialorder %v966, 0.0
    %vm1016 = vcmp.gt.f32.partialorder %v969, 0.0
    %vm1017 = vcmp.gt.f32.partialorder %v972, 0.0
    %vm1018 = vcmp.gt.f32.partialorder %v975, 0.0
    %vm1019 = vcmp.gt.f32.partialorder %v978, 0.0
    %vm1020 = vcmp.gt.f32.partialorder %v981, 0.0
    %vm1021 = vcmp.gt.f32.partialorder %v984, 0.0
    %vm1022 = vcmp.gt.f32.partialorder %v987, 0.0
    %vm1023 = vcmp.gt.f32.partialorder %v990, 0.0
    %v1024 = vmul.f32 %v897, 0.2
    %v1025 = vmul.f32 %v900, 0.2
    %v1026 = vmul.f32 %v903, 0.2
    %v1027 = vmul.f32 %v906, 0.2
    %v1028 = vmul.f32 %v909, 0.2
    %v1029 = vmul.f32 %v912, 0.2
    %v1030 = vmul.f32 %v915, 0.2
    %v1031 = vmul.f32 %v918, 0.2
    %v1032 = vmul.f32 %v921, 0.2
    %v1033 = vmul.f32 %v924, 0.2
    %v1034 = vmul.f32 %v927, 0.2
    %v1035 = vmul.f32 %v930, 0.2
    %v1036 = vmul.f32 %v933, 0.2
    %v1037 = vmul.f32 %v936, 0.2
    %v1038 = vmul.f32 %v939, 0.2
    %v1039 = vmul.f32 %v942, 0.2
    %v1040 = vmul.f32 %v945, 0.2
    %v1041 = vmul.f32 %v948, 0.2
    %v1042 = vmul.f32 %v951, 0.2
    %v1043 = vmul.f32 %v954, 0.2
    %v1044 = vmul.f32 %v957, 0.2
    %v1045 = vmul.f32 %v960, 0.2
    %v1046 = vmul.f32 %v963, 0.2
    %v1047 = vmul.f32 %v966, 0.2
    %v1048 = vmul.f32 %v969, 0.2
    %v1049 = vmul.f32 %v972, 0.2
    %v1050 = vmul.f32 %v975, 0.2
    %v1051 = vmul.f32 %v978, 0.2
    %v1052 = vmul.f32 %v981, 0.2
    %v1053 = vmul.f32 %v984, 0.2
    %v1054 = vmul.f32 %v987, 0.2
    %v1055 = vmul.f32 %v990, 0.2
    %v1056 = vsel %vm992, %v897, %v1024
    %v1057 = vsel %vm993, %v900, %v1025
    %v1058 = vsel %vm994, %v903, %v1026
    %v1059 = vsel %vm995, %v906, %v1027
    %v1060 = vsel %vm996, %v909, %v1028
    %v1061 = vsel %vm997, %v912, %v1029
    %v1062 = vsel %vm998, %v915, %v1030
    %v1063 = vsel %vm999, %v918, %v1031
    %v1064 = vsel %vm1000, %v921, %v1032
    %v1065 = vsel %vm1001, %v924, %v1033
    %v1066 = vsel %vm1002, %v927, %v1034
    %v1067 = vsel %vm1003, %v930, %v1035
    %v1068 = vsel %vm1004, %v933, %v1036
    %v1069 = vsel %vm1005, %v936, %v1037
    %v1070 = vsel %vm1006, %v939, %v1038
    %v1071 = vsel %vm1007, %v942, %v1039
    %v1072 = vsel %vm1008, %v945, %v1040
    %v1073 = vsel %vm1009, %v948, %v1041
    %v1074 = vsel %vm1010, %v951, %v1042
    %v1075 = vsel %vm1011, %v954, %v1043
    %v1076 = vsel %vm1012, %v957, %v1044
    %v1077 = vsel %vm1013, %v960, %v1045
    %v1078 = vsel %vm1014, %v963, %v1046
    %v1079 = vsel %vm1015, %v966, %v1047
    %v1080 = vsel %vm1016, %v969, %v1048
    %v1081 = vsel %vm1017, %v972, %v1049
    %v1082 = vsel %vm1018, %v975, %v1050
    %v1083 = vsel %vm1019, %v978, %v1051
    %v1084 = vsel %vm1020, %v981, %v1052
    %v1085 = vsel %vm1021, %v984, %v1053
    %v1086 = vsel %vm1022, %v987, %v1054
    %v1087 = vsel %vm1023, %v990, %v1055
    %v1088 = vld [vmem:[%s3] sm:$0x1]
    %v1090 = vperm.slane %v1088, 0
    %v1092 = vmul.f32 %v1056, %v1090
    %v1093 = vmul.f32 %v1057, %v1090
    %v1094 = vmul.f32 %v1058, %v1090
    %v1095 = vmul.f32 %v1059, %v1090
    %v1096 = vmul.f32 %v1060, %v1090
    %v1097 = vmul.f32 %v1061, %v1090
    %v1098 = vmul.f32 %v1062, %v1090
    %v1099 = vmul.f32 %v1063, %v1090
    %v1100 = vmul.f32 %v1064, %v1090
    %v1101 = vmul.f32 %v1065, %v1090
    %v1102 = vmul.f32 %v1066, %v1090
    %v1103 = vmul.f32 %v1067, %v1090
    %v1104 = vmul.f32 %v1068, %v1090
    %v1105 = vmul.f32 %v1069, %v1090
    %v1106 = vmul.f32 %v1070, %v1090
    %v1107 = vmul.f32 %v1071, %v1090
    %v1108 = vmul.f32 %v1072, %v1090
    %v1109 = vmul.f32 %v1073, %v1090
    %v1110 = vmul.f32 %v1074, %v1090
    %v1111 = vmul.f32 %v1075, %v1090
    %v1112 = vmul.f32 %v1076, %v1090
    %v1113 = vmul.f32 %v1077, %v1090
    %v1114 = vmul.f32 %v1078, %v1090
    %v1115 = vmul.f32 %v1079, %v1090
    %v1116 = vmul.f32 %v1080, %v1090
    %v1117 = vmul.f32 %v1081, %v1090
    %v1118 = vmul.f32 %v1082, %v1090
    %v1119 = vmul.f32 %v1083, %v1090
    %v1120 = vmul.f32 %v1084, %v1090
    %v1121 = vmul.f32 %v1085, %v1090
    %v1122 = vmul.f32 %v1086, %v1090
    %v1123 = vmul.f32 %v1087, %v1090
    %v1124 = vsel %vm782, %v1092, 0.0
    %1125 = vadd.xlane.f32.xlu0 %v1124
    %v1126 = vpop.xlane.xlu0 %1125
    %v1127 = vsel %vm782, %v1093, 0.0
    %1128 = vadd.xlane.f32.xlu0 %v1127
    %v1129 = vpop.xlane.xlu0 %1128
    %v1130 = vsel %vm782, %v1094, 0.0
    %1131 = vadd.xlane.f32.xlu0 %v1130
    %v1132 = vpop.xlane.xlu0 %1131
    %v1133 = vsel %vm782, %v1095, 0.0
    %1134 = vadd.xlane.f32.xlu0 %v1133
    %v1135 = vpop.xlane.xlu0 %1134
    %v1136 = vsel %vm782, %v1096, 0.0
    %1137 = vadd.xlane.f32.xlu0 %v1136
    %v1138 = vpop.xlane.xlu0 %1137
    %v1139 = vsel %vm782, %v1097, 0.0
    %1140 = vadd.xlane.f32.xlu0 %v1139
    %v1141 = vpop.xlane.xlu0 %1140
    %v1142 = vsel %vm782, %v1098, 0.0
    %1143 = vadd.xlane.f32.xlu0 %v1142
    %v1144 = vpop.xlane.xlu0 %1143
    %v1145 = vsel %vm782, %v1099, 0.0
    %1146 = vadd.xlane.f32.xlu0 %v1145
    %v1147 = vpop.xlane.xlu0 %1146
    %v1148 = vsel %vm782, %v1100, 0.0
    %1149 = vadd.xlane.f32.xlu0 %v1148
    %v1150 = vpop.xlane.xlu0 %1149
    %v1151 = vsel %vm782, %v1101, 0.0
    %1152 = vadd.xlane.f32.xlu0 %v1151
    %v1153 = vpop.xlane.xlu0 %1152
    %v1154 = vsel %vm782, %v1102, 0.0
    %1155 = vadd.xlane.f32.xlu0 %v1154
    %v1156 = vpop.xlane.xlu0 %1155
    %v1157 = vsel %vm782, %v1103, 0.0
    %1158 = vadd.xlane.f32.xlu0 %v1157
    %v1159 = vpop.xlane.xlu0 %1158
    %v1160 = vsel %vm782, %v1104, 0.0
    %1161 = vadd.xlane.f32.xlu0 %v1160
    %v1162 = vpop.xlane.xlu0 %1161
    %v1163 = vsel %vm782, %v1105, 0.0
    %1164 = vadd.xlane.f32.xlu0 %v1163
    %v1165 = vpop.xlane.xlu0 %1164
    %v1166 = vsel %vm782, %v1106, 0.0
    %1167 = vadd.xlane.f32.xlu0 %v1166
    %v1168 = vpop.xlane.xlu0 %1167
    %v1169 = vsel %vm782, %v1107, 0.0
    %1170 = vadd.xlane.f32.xlu0 %v1169
    %v1171 = vpop.xlane.xlu0 %1170
    %v1172 = vsel %vm782, %v1108, 0.0
    %1173 = vadd.xlane.f32.xlu0 %v1172
    %v1174 = vpop.xlane.xlu0 %1173
    %v1175 = vsel %vm782, %v1109, 0.0
    %1176 = vadd.xlane.f32.xlu0 %v1175
    %v1177 = vpop.xlane.xlu0 %1176
    %v1178 = vsel %vm782, %v1110, 0.0
    %1179 = vadd.xlane.f32.xlu0 %v1178
    %v1180 = vpop.xlane.xlu0 %1179
    %v1181 = vsel %vm782, %v1111, 0.0
    %1182 = vadd.xlane.f32.xlu0 %v1181
    %v1183 = vpop.xlane.xlu0 %1182
    %v1184 = vsel %vm782, %v1112, 0.0
    %1185 = vadd.xlane.f32.xlu0 %v1184
    %v1186 = vpop.xlane.xlu0 %1185
    %v1187 = vsel %vm782, %v1113, 0.0
    %1188 = vadd.xlane.f32.xlu0 %v1187
    %v1189 = vpop.xlane.xlu0 %1188
    %v1190 = vsel %vm782, %v1114, 0.0
    %1191 = vadd.xlane.f32.xlu0 %v1190
    %v1192 = vpop.xlane.xlu0 %1191
    %v1193 = vsel %vm782, %v1115, 0.0
    %1194 = vadd.xlane.f32.xlu0 %v1193
    %v1195 = vpop.xlane.xlu0 %1194
    %v1196 = vsel %vm782, %v1116, 0.0
    %1197 = vadd.xlane.f32.xlu0 %v1196
    %v1198 = vpop.xlane.xlu0 %1197
    %v1199 = vsel %vm782, %v1117, 0.0
    %1200 = vadd.xlane.f32.xlu0 %v1199
    %v1201 = vpop.xlane.xlu0 %1200
    %v1202 = vsel %vm782, %v1118, 0.0
    %1203 = vadd.xlane.f32.xlu0 %v1202
    %v1204 = vpop.xlane.xlu0 %1203
    %v1205 = vsel %vm782, %v1119, 0.0
    %1206 = vadd.xlane.f32.xlu0 %v1205
    %v1207 = vpop.xlane.xlu0 %1206
    %v1208 = vsel %vm782, %v1120, 0.0
    %1209 = vadd.xlane.f32.xlu0 %v1208
    %v1210 = vpop.xlane.xlu0 %1209
    %v1211 = vsel %vm782, %v1121, 0.0
    %1212 = vadd.xlane.f32.xlu0 %v1211
    %v1213 = vpop.xlane.xlu0 %1212
    %v1214 = vsel %vm782, %v1122, 0.0
    %1215 = vadd.xlane.f32.xlu0 %v1214
    %v1216 = vpop.xlane.xlu0 %1215
    %v1217 = vsel %vm782, %v1123, 0.0
    %1218 = vadd.xlane.f32.xlu0 %v1217
    %v1219 = vpop.xlane.xlu0 %1218
    %vm1220 = vcmp.gt.f32.partialorder %v1126, 0.0
    %vm1221 = vcmp.gt.f32.partialorder %v1129, 0.0
    %vm1222 = vcmp.gt.f32.partialorder %v1132, 0.0
    %vm1223 = vcmp.gt.f32.partialorder %v1135, 0.0
    %vm1224 = vcmp.gt.f32.partialorder %v1138, 0.0
    %vm1225 = vcmp.gt.f32.partialorder %v1141, 0.0
    %vm1226 = vcmp.gt.f32.partialorder %v1144, 0.0
    %vm1227 = vcmp.gt.f32.partialorder %v1147, 0.0
    %vm1228 = vcmp.gt.f32.partialorder %v1150, 0.0
    %vm1229 = vcmp.gt.f32.partialorder %v1153, 0.0
    %vm1230 = vcmp.gt.f32.partialorder %v1156, 0.0
    %vm1231 = vcmp.gt.f32.partialorder %v1159, 0.0
    %vm1232 = vcmp.gt.f32.partialorder %v1162, 0.0
    %vm1233 = vcmp.gt.f32.partialorder %v1165, 0.0
    %vm1234 = vcmp.gt.f32.partialorder %v1168, 0.0
    %vm1235 = vcmp.gt.f32.partialorder %v1171, 0.0
    %vm1236 = vcmp.gt.f32.partialorder %v1174, 0.0
    %vm1237 = vcmp.gt.f32.partialorder %v1177, 0.0
    %vm1238 = vcmp.gt.f32.partialorder %v1180, 0.0
    %vm1239 = vcmp.gt.f32.partialorder %v1183, 0.0
    %vm1240 = vcmp.gt.f32.partialorder %v1186, 0.0
    %vm1241 = vcmp.gt.f32.partialorder %v1189, 0.0
    %vm1242 = vcmp.gt.f32.partialorder %v1192, 0.0
    %vm1243 = vcmp.gt.f32.partialorder %v1195, 0.0
    %vm1244 = vcmp.gt.f32.partialorder %v1198, 0.0
    %vm1245 = vcmp.gt.f32.partialorder %v1201, 0.0
    %vm1246 = vcmp.gt.f32.partialorder %v1204, 0.0
    %vm1247 = vcmp.gt.f32.partialorder %v1207, 0.0
    %vm1248 = vcmp.gt.f32.partialorder %v1210, 0.0
    %vm1249 = vcmp.gt.f32.partialorder %v1213, 0.0
    %vm1250 = vcmp.gt.f32.partialorder %v1216, 0.0
    %vm1251 = vcmp.gt.f32.partialorder %v1219, 0.0
    %v1252 = vmul.f32 %v1126, 0.2
    %v1253 = vmul.f32 %v1129, 0.2
    %v1254 = vmul.f32 %v1132, 0.2
    %v1255 = vmul.f32 %v1135, 0.2
    %v1256 = vmul.f32 %v1138, 0.2
    %v1257 = vmul.f32 %v1141, 0.2
    %v1258 = vmul.f32 %v1144, 0.2
    %v1259 = vmul.f32 %v1147, 0.2
    %v1260 = vmul.f32 %v1150, 0.2
    %v1261 = vmul.f32 %v1153, 0.2
    %v1262 = vmul.f32 %v1156, 0.2
    %v1263 = vmul.f32 %v1159, 0.2
    %v1264 = vmul.f32 %v1162, 0.2
    %v1265 = vmul.f32 %v1165, 0.2
    %v1266 = vmul.f32 %v1168, 0.2
    %v1267 = vmul.f32 %v1171, 0.2
    %v1268 = vmul.f32 %v1174, 0.2
    %v1269 = vmul.f32 %v1177, 0.2
    %v1270 = vmul.f32 %v1180, 0.2
    %v1271 = vmul.f32 %v1183, 0.2
    %v1272 = vmul.f32 %v1186, 0.2
    %v1273 = vmul.f32 %v1189, 0.2
    %v1274 = vmul.f32 %v1192, 0.2
    %v1275 = vmul.f32 %v1195, 0.2
    %v1276 = vmul.f32 %v1198, 0.2
    %v1277 = vmul.f32 %v1201, 0.2
    %v1278 = vmul.f32 %v1204, 0.2
    %v1279 = vmul.f32 %v1207, 0.2
    %v1280 = vmul.f32 %v1210, 0.2
    %v1281 = vmul.f32 %v1213, 0.2
    %v1282 = vmul.f32 %v1216, 0.2
    %v1283 = vmul.f32 %v1219, 0.2
    %v1284 = vsel %vm1220, %v1126, %v1252
    %v1285 = vsel %vm1221, %v1129, %v1253
    %v1286 = vsel %vm1222, %v1132, %v1254
    %v1287 = vsel %vm1223, %v1135, %v1255
    %v1288 = vsel %vm1224, %v1138, %v1256
    %v1289 = vsel %vm1225, %v1141, %v1257
    %v1290 = vsel %vm1226, %v1144, %v1258
    %v1291 = vsel %vm1227, %v1147, %v1259
    %v1292 = vsel %vm1228, %v1150, %v1260
    %v1293 = vsel %vm1229, %v1153, %v1261
    %v1294 = vsel %vm1230, %v1156, %v1262
    %v1295 = vsel %vm1231, %v1159, %v1263
    %v1296 = vsel %vm1232, %v1162, %v1264
    %v1297 = vsel %vm1233, %v1165, %v1265
    %v1298 = vsel %vm1234, %v1168, %v1266
    %v1299 = vsel %vm1235, %v1171, %v1267
    %v1300 = vsel %vm1236, %v1174, %v1268
    %v1301 = vsel %vm1237, %v1177, %v1269
    %v1302 = vsel %vm1238, %v1180, %v1270
    %v1303 = vsel %vm1239, %v1183, %v1271
    %v1304 = vsel %vm1240, %v1186, %v1272
    %v1305 = vsel %vm1241, %v1189, %v1273
    %v1306 = vsel %vm1242, %v1192, %v1274
    %v1307 = vsel %vm1243, %v1195, %v1275
    %v1308 = vsel %vm1244, %v1198, %v1276
    %v1309 = vsel %vm1245, %v1201, %v1277
    %v1310 = vsel %vm1246, %v1204, %v1278
    %v1311 = vsel %vm1247, %v1207, %v1279
    %v1312 = vsel %vm1248, %v1210, %v1280
    %v1313 = vsel %vm1249, %v1213, %v1281
    %v1314 = vsel %vm1250, %v1216, %v1282
    %v1315 = vsel %vm1251, %v1219, %v1283
    %v1348 = vperm.slane %v1284, 0
    %v1349 = vperm.slane %v1284, 1
    %v1350 = vperm.slane %v1284, 2
    %v1351 = vperm.slane %v1284, 3
    %v1352 = vperm.slane %v1284, 4
    %v1353 = vperm.slane %v1284, 5
    %v1354 = vperm.slane %v1284, 6
    %v1355 = vperm.slane %v1284, 7
    %v1356 = vperm.slane %v1285, 0
    %v1357 = vperm.slane %v1285, 1
    %v1358 = vperm.slane %v1285, 2
    %v1359 = vperm.slane %v1285, 3
    %v1360 = vperm.slane %v1285, 4
    %v1361 = vperm.slane %v1285, 5
    %v1362 = vperm.slane %v1285, 6
    %v1363 = vperm.slane %v1285, 7
    %v1364 = vperm.slane %v1286, 0
    %v1365 = vperm.slane %v1286, 1
    %v1366 = vperm.slane %v1286, 2
    %v1367 = vperm.slane %v1286, 3
    %v1368 = vperm.slane %v1286, 4
    %v1369 = vperm.slane %v1286, 5
    %v1370 = vperm.slane %v1286, 6
    %v1371 = vperm.slane %v1286, 7
    %v1372 = vperm.slane %v1287, 0
    %v1373 = vperm.slane %v1287, 1
    %v1374 = vperm.slane %v1287, 2
    %v1375 = vperm.slane %v1287, 3
    %v1376 = vperm.slane %v1287, 4
    %v1377 = vperm.slane %v1287, 5
    %v1378 = vperm.slane %v1287, 6
    %v1379 = vperm.slane %v1287, 7
    %v1380 = vperm.slane %v1288, 0
    %v1381 = vperm.slane %v1288, 1
    %v1382 = vperm.slane %v1288, 2
    %v1383 = vperm.slane %v1288, 3
    %v1384 = vperm.slane %v1288, 4
    %v1385 = vperm.slane %v1288, 5
    %v1386 = vperm.slane %v1288, 6
    %v1387 = vperm.slane %v1288, 7
    %v1388 = vperm.slane %v1289, 0
    %v1389 = vperm.slane %v1289, 1
    %v1390 = vperm.slane %v1289, 2
    %v1391 = vperm.slane %v1289, 3
    %v1392 = vperm.slane %v1289, 4
    %v1393 = vperm.slane %v1289, 5
    %v1394 = vperm.slane %v1289, 6
    %v1395 = vperm.slane %v1289, 7
    %v1396 = vperm.slane %v1290, 0
    %v1397 = vperm.slane %v1290, 1
    %v1398 = vperm.slane %v1290, 2
    %v1399 = vperm.slane %v1290, 3
    %v1400 = vperm.slane %v1290, 4
    %v1401 = vperm.slane %v1290, 5
    %v1402 = vperm.slane %v1290, 6
    %v1403 = vperm.slane %v1290, 7
    %v1404 = vperm.slane %v1291, 0
    %v1405 = vperm.slane %v1291, 1
    %v1406 = vperm.slane %v1291, 2
    %v1407 = vperm.slane %v1291, 3
    %v1408 = vperm.slane %v1291, 4
    %v1409 = vperm.slane %v1291, 5
    %v1410 = vperm.slane %v1291, 6
    %v1411 = vperm.slane %v1291, 7
    %v1412 = vperm.slane %v1292, 0
    %v1413 = vperm.slane %v1292, 1
    %v1414 = vperm.slane %v1292, 2
    %v1415 = vperm.slane %v1292, 3
    %v1416 = vperm.slane %v1292, 4
    %v1417 = vperm.slane %v1292, 5
    %v1418 = vperm.slane %v1292, 6
    %v1419 = vperm.slane %v1292, 7
    %v1420 = vperm.slane %v1293, 0
    %v1421 = vperm.slane %v1293, 1
    %v1422 = vperm.slane %v1293, 2
    %v1423 = vperm.slane %v1293, 3
    %v1424 = vperm.slane %v1293, 4
    %v1425 = vperm.slane %v1293, 5
    %v1426 = vperm.slane %v1293, 6
    %v1427 = vperm.slane %v1293, 7
    %v1428 = vperm.slane %v1294, 0
    %v1429 = vperm.slane %v1294, 1
    %v1430 = vperm.slane %v1294, 2
    %v1431 = vperm.slane %v1294, 3
    %v1432 = vperm.slane %v1294, 4
    %v1433 = vperm.slane %v1294, 5
    %v1434 = vperm.slane %v1294, 6
    %v1435 = vperm.slane %v1294, 7
    %v1436 = vperm.slane %v1295, 0
    %v1437 = vperm.slane %v1295, 1
    %v1438 = vperm.slane %v1295, 2
    %v1439 = vperm.slane %v1295, 3
    %v1440 = vperm.slane %v1295, 4
    %v1441 = vperm.slane %v1295, 5
    %v1442 = vperm.slane %v1295, 6
    %v1443 = vperm.slane %v1295, 7
    %v1444 = vperm.slane %v1296, 0
    %v1445 = vperm.slane %v1296, 1
    %v1446 = vperm.slane %v1296, 2
    %v1447 = vperm.slane %v1296, 3
    %v1448 = vperm.slane %v1296, 4
    %v1449 = vperm.slane %v1296, 5
    %v1450 = vperm.slane %v1296, 6
    %v1451 = vperm.slane %v1296, 7
    %v1452 = vperm.slane %v1297, 0
    %v1453 = vperm.slane %v1297, 1
    %v1454 = vperm.slane %v1297, 2
    %v1455 = vperm.slane %v1297, 3
    %v1456 = vperm.slane %v1297, 4
    %v1457 = vperm.slane %v1297, 5
    %v1458 = vperm.slane %v1297, 6
    %v1459 = vperm.slane %v1297, 7
    %v1460 = vperm.slane %v1298, 0
    %v1461 = vperm.slane %v1298, 1
    %v1462 = vperm.slane %v1298, 2
    %v1463 = vperm.slane %v1298, 3
    %v1464 = vperm.slane %v1298, 4
    %v1465 = vperm.slane %v1298, 5
    %v1466 = vperm.slane %v1298, 6
    %v1467 = vperm.slane %v1298, 7
    %v1468 = vperm.slane %v1299, 0
    %v1469 = vperm.slane %v1299, 1
    %v1470 = vperm.slane %v1299, 2
    %v1471 = vperm.slane %v1299, 3
    %v1472 = vperm.slane %v1299, 4
    %v1473 = vperm.slane %v1299, 5
    %v1474 = vperm.slane %v1299, 6
    %v1475 = vperm.slane %v1299, 7
    %v1476 = vperm.slane %v1300, 0
    %v1477 = vperm.slane %v1300, 1
    %v1478 = vperm.slane %v1300, 2
    %v1479 = vperm.slane %v1300, 3
    %v1480 = vperm.slane %v1300, 4
    %v1481 = vperm.slane %v1300, 5
    %v1482 = vperm.slane %v1300, 6
    %v1483 = vperm.slane %v1300, 7
    %v1484 = vperm.slane %v1301, 0
    %v1485 = vperm.slane %v1301, 1
    %v1486 = vperm.slane %v1301, 2
    %v1487 = vperm.slane %v1301, 3
    %v1488 = vperm.slane %v1301, 4
    %v1489 = vperm.slane %v1301, 5
    %v1490 = vperm.slane %v1301, 6
    %v1491 = vperm.slane %v1301, 7
    %v1492 = vperm.slane %v1302, 0
    %v1493 = vperm.slane %v1302, 1
    %v1494 = vperm.slane %v1302, 2
    %v1495 = vperm.slane %v1302, 3
    %v1496 = vperm.slane %v1302, 4
    %v1497 = vperm.slane %v1302, 5
    %v1498 = vperm.slane %v1302, 6
    %v1499 = vperm.slane %v1302, 7
    %v1500 = vperm.slane %v1303, 0
    %v1501 = vperm.slane %v1303, 1
    %v1502 = vperm.slane %v1303, 2
    %v1503 = vperm.slane %v1303, 3
    %v1504 = vperm.slane %v1303, 4
    %v1505 = vperm.slane %v1303, 5
    %v1506 = vperm.slane %v1303, 6
    %v1507 = vperm.slane %v1303, 7
    %v1508 = vperm.slane %v1304, 0
    %v1509 = vperm.slane %v1304, 1
    %v1510 = vperm.slane %v1304, 2
    %v1511 = vperm.slane %v1304, 3
    %v1512 = vperm.slane %v1304, 4
    %v1513 = vperm.slane %v1304, 5
    %v1514 = vperm.slane %v1304, 6
    %v1515 = vperm.slane %v1304, 7
    %v1516 = vperm.slane %v1305, 0
    %v1517 = vperm.slane %v1305, 1
    %v1518 = vperm.slane %v1305, 2
    %v1519 = vperm.slane %v1305, 3
    %v1520 = vperm.slane %v1305, 4
    %v1521 = vperm.slane %v1305, 5
    %v1522 = vperm.slane %v1305, 6
    %v1523 = vperm.slane %v1305, 7
    %v1524 = vperm.slane %v1306, 0
    %v1525 = vperm.slane %v1306, 1
    %v1526 = vperm.slane %v1306, 2
    %v1527 = vperm.slane %v1306, 3
    %v1528 = vperm.slane %v1306, 4
    %v1529 = vperm.slane %v1306, 5
    %v1530 = vperm.slane %v1306, 6
    %v1531 = vperm.slane %v1306, 7
    %v1532 = vperm.slane %v1307, 0
    %v1533 = vperm.slane %v1307, 1
    %v1534 = vperm.slane %v1307, 2
    %v1535 = vperm.slane %v1307, 3
    %v1536 = vperm.slane %v1307, 4
    %v1537 = vperm.slane %v1307, 5
    %v1538 = vperm.slane %v1307, 6
    %v1539 = vperm.slane %v1307, 7
    %v1540 = vperm.slane %v1308, 0
    %v1541 = vperm.slane %v1308, 1
    %v1542 = vperm.slane %v1308, 2
    %v1543 = vperm.slane %v1308, 3
    %v1544 = vperm.slane %v1308, 4
    %v1545 = vperm.slane %v1308, 5
    %v1546 = vperm.slane %v1308, 6
    %v1547 = vperm.slane %v1308, 7
    %v1548 = vperm.slane %v1309, 0
    %v1549 = vperm.slane %v1309, 1
    %v1550 = vperm.slane %v1309, 2
    %v1551 = vperm.slane %v1309, 3
    %v1552 = vperm.slane %v1309, 4
    %v1553 = vperm.slane %v1309, 5
    %v1554 = vperm.slane %v1309, 6
    %v1555 = vperm.slane %v1309, 7
    %v1556 = vperm.slane %v1310, 0
    %v1557 = vperm.slane %v1310, 1
    %v1558 = vperm.slane %v1310, 2
    %v1559 = vperm.slane %v1310, 3
    %v1560 = vperm.slane %v1310, 4
    %v1561 = vperm.slane %v1310, 5
    %v1562 = vperm.slane %v1310, 6
    %v1563 = vperm.slane %v1310, 7
    %v1564 = vperm.slane %v1311, 0
    %v1565 = vperm.slane %v1311, 1
    %v1566 = vperm.slane %v1311, 2
    %v1567 = vperm.slane %v1311, 3
    %v1568 = vperm.slane %v1311, 4
    %v1569 = vperm.slane %v1311, 5
    %v1570 = vperm.slane %v1311, 6
    %v1571 = vperm.slane %v1311, 7
    %v1572 = vperm.slane %v1312, 0
    %v1573 = vperm.slane %v1312, 1
    %v1574 = vperm.slane %v1312, 2
    %v1575 = vperm.slane %v1312, 3
    %v1576 = vperm.slane %v1312, 4
    %v1577 = vperm.slane %v1312, 5
    %v1578 = vperm.slane %v1312, 6
    %v1579 = vperm.slane %v1312, 7
    %v1580 = vperm.slane %v1313, 0
    %v1581 = vperm.slane %v1313, 1
    %v1582 = vperm.slane %v1313, 2
    %v1583 = vperm.slane %v1313, 3
    %v1584 = vperm.slane %v1313, 4
    %v1585 = vperm.slane %v1313, 5
    %v1586 = vperm.slane %v1313, 6
    %v1587 = vperm.slane %v1313, 7
    %v1588 = vperm.slane %v1314, 0
    %v1589 = vperm.slane %v1314, 1
    %v1590 = vperm.slane %v1314, 2
    %v1591 = vperm.slane %v1314, 3
    %v1592 = vperm.slane %v1314, 4
    %v1593 = vperm.slane %v1314, 5
    %v1594 = vperm.slane %v1314, 6
    %v1595 = vperm.slane %v1314, 7
    %v1596 = vperm.slane %v1315, 0
    %v1597 = vperm.slane %v1315, 1
    %v1598 = vperm.slane %v1315, 2
    %v1599 = vperm.slane %v1315, 3
    %v1600 = vperm.slane %v1315, 4
    %v1601 = vperm.slane %v1315, 5
    %v1602 = vperm.slane %v1315, 6
    %v1603 = vperm.slane %v1315, 7
    %1604 = vst [vmem:[#allocation1] ss:$9 sm:$0xff] %v1348
    %s1605 = scalar_lea.vmem [#allocation1], 1
    %1606 = vst [vmem:[%s1605] ss:$9 sm:$0xff] %v1349
    %s1607 = scalar_lea.vmem [#allocation1], 2
    %1608 = vst [vmem:[%s1607] ss:$9 sm:$0xff] %v1350
    %s1609 = scalar_lea.vmem [#allocation1], 3
    %1610 = vst [vmem:[%s1609] ss:$9 sm:$0xff] %v1351
    %s1611 = scalar_lea.vmem [#allocation1], 4
    %1612 = vst [vmem:[%s1611] ss:$9 sm:$0xff] %v1352
    %s1613 = scalar_lea.vmem [#allocation1], 5
    %1614 = vst [vmem:[%s1613] ss:$9 sm:$0xff] %v1353
    %s1615 = scalar_lea.vmem [#allocation1], 6
    %1616 = vst [vmem:[%s1615] ss:$9 sm:$0xff] %v1354
    %s1617 = scalar_lea.vmem [#allocation1], 7
    %1618 = vst [vmem:[%s1617] ss:$9 sm:$0xff] %v1355
    %v1619 = vld [vmem:[#allocation1] sm:$0xff]
    %1620 = vst [vmem:[#allocation1] ss:$9 sm:$0xff] %v1356
    %1621 = vst [vmem:[%s1605] ss:$9 sm:$0xff] %v1357
    %1622 = vst [vmem:[%s1607] ss:$9 sm:$0xff] %v1358
    %1623 = vst [vmem:[%s1609] ss:$9 sm:$0xff] %v1359
    %1624 = vst [vmem:[%s1611] ss:$9 sm:$0xff] %v1360
    %1625 = vst [vmem:[%s1613] ss:$9 sm:$0xff] %v1361
    %1626 = vst [vmem:[%s1615] ss:$9 sm:$0xff] %v1362
    %1627 = vst [vmem:[%s1617] ss:$9 sm:$0xff] %v1363
    %v1628 = vld [vmem:[#allocation1] sm:$0xff]
    %1629 = vst [vmem:[#allocation1] ss:$9 sm:$0xff] %v1364
    %1630 = vst [vmem:[%s1605] ss:$9 sm:$0xff] %v1365
    %1631 = vst [vmem:[%s1607] ss:$9 sm:$0xff] %v1366
    %1632 = vst [vmem:[%s1609] ss:$9 sm:$0xff] %v1367
    %1633 = vst [vmem:[%s1611] ss:$9 sm:$0xff] %v1368
    %1634 = vst [vmem:[%s1613] ss:$9 sm:$0xff] %v1369
    %1635 = vst [vmem:[%s1615] ss:$9 sm:$0xff] %v1370
    %1636 = vst [vmem:[%s1617] ss:$9 sm:$0xff] %v1371
    %v1637 = vld [vmem:[#allocation1] sm:$0xff]
    %1638 = vst [vmem:[#allocation1] ss:$9 sm:$0xff] %v1372
    %1639 = vst [vmem:[%s1605] ss:$9 sm:$0xff] %v1373
    %1640 = vst [vmem:[%s1607] ss:$9 sm:$0xff] %v1374
    %1641 = vst [vmem:[%s1609] ss:$9 sm:$0xff] %v1375
    %1642 = vst [vmem:[%s1611] ss:$9 sm:$0xff] %v1376
    %1643 = vst [vmem:[%s1613] ss:$9 sm:$0xff] %v1377
    %1644 = vst [vmem:[%s1615] ss:$9 sm:$0xff] %v1378
    %1645 = vst [vmem:[%s1617] ss:$9 sm:$0xff] %v1379
    %v1646 = vld [vmem:[#allocation1] sm:$0xff]
    %1647 = vst [vmem:[#allocation1] ss:$9 sm:$0xff] %v1380
    %1648 = vst [vmem:[%s1605] ss:$9 sm:$0xff] %v1381
    %1649 = vst [vmem:[%s1607] ss:$9 sm:$0xff] %v1382
    %1650 = vst [vmem:[%s1609] ss:$9 sm:$0xff] %v1383
    %1651 = vst [vmem:[%s1611] ss:$9 sm:$0xff] %v1384
    %1652 = vst [vmem:[%s1613] ss:$9 sm:$0xff] %v1385
    %1653 = vst [vmem:[%s1615] ss:$9 sm:$0xff] %v1386
    %1654 = vst [vmem:[%s1617] ss:$9 sm:$0xff] %v1387
    %v1655 = vld [vmem:[#allocation1] sm:$0xff]
    %1656 = vst [vmem:[#allocation1] ss:$9 sm:$0xff] %v1388
    %1657 = vst [vmem:[%s1605] ss:$9 sm:$0xff] %v1389
    %1658 = vst [vmem:[%s1607] ss:$9 sm:$0xff] %v1390
    %1659 = vst [vmem:[%s1609] ss:$9 sm:$0xff] %v1391
    %1660 = vst [vmem:[%s1611] ss:$9 sm:$0xff] %v1392
    %1661 = vst [vmem:[%s1613] ss:$9 sm:$0xff] %v1393
    %1662 = vst [vmem:[%s1615] ss:$9 sm:$0xff] %v1394
    %1663 = vst [vmem:[%s1617] ss:$9 sm:$0xff] %v1395
    %v1664 = vld [vmem:[#allocation1] sm:$0xff]
    %1665 = vst [vmem:[#allocation1] ss:$9 sm:$0xff] %v1396
    %1666 = vst [vmem:[%s1605] ss:$9 sm:$0xff] %v1397
    %1667 = vst [vmem:[%s1607] ss:$9 sm:$0xff] %v1398
    %1668 = vst [vmem:[%s1609] ss:$9 sm:$0xff] %v1399
    %1669 = vst [vmem:[%s1611] ss:$9 sm:$0xff] %v1400
    %1670 = vst [vmem:[%s1613] ss:$9 sm:$0xff] %v1401
    %1671 = vst [vmem:[%s1615] ss:$9 sm:$0xff] %v1402
    %1672 = vst [vmem:[%s1617] ss:$9 sm:$0xff] %v1403
    %v1673 = vld [vmem:[#allocation1] sm:$0xff]
    %1674 = vst [vmem:[#allocation1] ss:$9 sm:$0xff] %v1404
    %1675 = vst [vmem:[%s1605] ss:$9 sm:$0xff] %v1405
    %1676 = vst [vmem:[%s1607] ss:$9 sm:$0xff] %v1406
    %1677 = vst [vmem:[%s1609] ss:$9 sm:$0xff] %v1407
    %1678 = vst [vmem:[%s1611] ss:$9 sm:$0xff] %v1408
    %1679 = vst [vmem:[%s1613] ss:$9 sm:$0xff] %v1409
    %1680 = vst [vmem:[%s1615] ss:$9 sm:$0xff] %v1410
    %1681 = vst [vmem:[%s1617] ss:$9 sm:$0xff] %v1411
    %v1682 = vld [vmem:[#allocation1] sm:$0xff]
    %1683 = vst [vmem:[#allocation1] ss:$9 sm:$0xff] %v1412
    %1684 = vst [vmem:[%s1605] ss:$9 sm:$0xff] %v1413
    %1685 = vst [vmem:[%s1607] ss:$9 sm:$0xff] %v1414
    %1686 = vst [vmem:[%s1609] ss:$9 sm:$0xff] %v1415
    %1687 = vst [vmem:[%s1611] ss:$9 sm:$0xff] %v1416
    %1688 = vst [vmem:[%s1613] ss:$9 sm:$0xff] %v1417
    %1689 = vst [vmem:[%s1615] ss:$9 sm:$0xff] %v1418
    %1690 = vst [vmem:[%s1617] ss:$9 sm:$0xff] %v1419
    %v1691 = vld [vmem:[#allocation1] sm:$0xff]
    %1692 = vst [vmem:[#allocation1] ss:$9 sm:$0xff] %v1420
    %1693 = vst [vmem:[%s1605] ss:$9 sm:$0xff] %v1421
    %1694 = vst [vmem:[%s1607] ss:$9 sm:$0xff] %v1422
    %1695 = vst [vmem:[%s1609] ss:$9 sm:$0xff] %v1423
    %1696 = vst [vmem:[%s1611] ss:$9 sm:$0xff] %v1424
    %1697 = vst [vmem:[%s1613] ss:$9 sm:$0xff] %v1425
    %1698 = vst [vmem:[%s1615] ss:$9 sm:$0xff] %v1426
    %1699 = vst [vmem:[%s1617] ss:$9 sm:$0xff] %v1427
    %v1700 = vld [vmem:[#allocation1] sm:$0xff]
    %1701 = vst [vmem:[#allocation1] ss:$9 sm:$0xff] %v1428
    %1702 = vst [vmem:[%s1605] ss:$9 sm:$0xff] %v1429
    %1703 = vst [vmem:[%s1607] ss:$9 sm:$0xff] %v1430
    %1704 = vst [vmem:[%s1609] ss:$9 sm:$0xff] %v1431
    %1705 = vst [vmem:[%s1611] ss:$9 sm:$0xff] %v1432
    %1706 = vst [vmem:[%s1613] ss:$9 sm:$0xff] %v1433
    %1707 = vst [vmem:[%s1615] ss:$9 sm:$0xff] %v1434
    %1708 = vst [vmem:[%s1617] ss:$9 sm:$0xff] %v1435
    %v1709 = vld [vmem:[#allocation1] sm:$0xff]
    %1710 = vst [vmem:[#allocation1] ss:$9 sm:$0xff] %v1436
    %1711 = vst [vmem:[%s1605] ss:$9 sm:$0xff] %v1437
    %1712 = vst [vmem:[%s1607] ss:$9 sm:$0xff] %v1438
    %1713 = vst [vmem:[%s1609] ss:$9 sm:$0xff] %v1439
    %1714 = vst [vmem:[%s1611] ss:$9 sm:$0xff] %v1440
    %1715 = vst [vmem:[%s1613] ss:$9 sm:$0xff] %v1441
    %1716 = vst [vmem:[%s1615] ss:$9 sm:$0xff] %v1442
    %1717 = vst [vmem:[%s1617] ss:$9 sm:$0xff] %v1443
    %v1718 = vld [vmem:[#allocation1] sm:$0xff]
    %1719 = vst [vmem:[#allocation1] ss:$9 sm:$0xff] %v1444
    %1720 = vst [vmem:[%s1605] ss:$9 sm:$0xff] %v1445
    %1721 = vst [vmem:[%s1607] ss:$9 sm:$0xff] %v1446
    %1722 = vst [vmem:[%s1609] ss:$9 sm:$0xff] %v1447
    %1723 = vst [vmem:[%s1611] ss:$9 sm:$0xff] %v1448
    %1724 = vst [vmem:[%s1613] ss:$9 sm:$0xff] %v1449
    %1725 = vst [vmem:[%s1615] ss:$9 sm:$0xff] %v1450
    %1726 = vst [vmem:[%s1617] ss:$9 sm:$0xff] %v1451
    %v1727 = vld [vmem:[#allocation1] sm:$0xff]
    %1728 = vst [vmem:[#allocation1] ss:$9 sm:$0xff] %v1452
    %1729 = vst [vmem:[%s1605] ss:$9 sm:$0xff] %v1453
    %1730 = vst [vmem:[%s1607] ss:$9 sm:$0xff] %v1454
    %1731 = vst [vmem:[%s1609] ss:$9 sm:$0xff] %v1455
    %1732 = vst [vmem:[%s1611] ss:$9 sm:$0xff] %v1456
    %1733 = vst [vmem:[%s1613] ss:$9 sm:$0xff] %v1457
    %1734 = vst [vmem:[%s1615] ss:$9 sm:$0xff] %v1458
    %1735 = vst [vmem:[%s1617] ss:$9 sm:$0xff] %v1459
    %v1736 = vld [vmem:[#allocation1] sm:$0xff]
    %1737 = vst [vmem:[#allocation1] ss:$9 sm:$0xff] %v1460
    %1738 = vst [vmem:[%s1605] ss:$9 sm:$0xff] %v1461
    %1739 = vst [vmem:[%s1607] ss:$9 sm:$0xff] %v1462
    %1740 = vst [vmem:[%s1609] ss:$9 sm:$0xff] %v1463
    %1741 = vst [vmem:[%s1611] ss:$9 sm:$0xff] %v1464
    %1742 = vst [vmem:[%s1613] ss:$9 sm:$0xff] %v1465
    %1743 = vst [vmem:[%s1615] ss:$9 sm:$0xff] %v1466
    %1744 = vst [vmem:[%s1617] ss:$9 sm:$0xff] %v1467
    %v1745 = vld [vmem:[#allocation1] sm:$0xff]
    %1746 = vst [vmem:[#allocation1] ss:$9 sm:$0xff] %v1468
    %1747 = vst [vmem:[%s1605] ss:$9 sm:$0xff] %v1469
    %1748 = vst [vmem:[%s1607] ss:$9 sm:$0xff] %v1470
    %1749 = vst [vmem:[%s1609] ss:$9 sm:$0xff] %v1471
    %1750 = vst [vmem:[%s1611] ss:$9 sm:$0xff] %v1472
    %1751 = vst [vmem:[%s1613] ss:$9 sm:$0xff] %v1473
    %1752 = vst [vmem:[%s1615] ss:$9 sm:$0xff] %v1474
    %1753 = vst [vmem:[%s1617] ss:$9 sm:$0xff] %v1475
    %v1754 = vld [vmem:[#allocation1] sm:$0xff]
    %1755 = vst [vmem:[#allocation1] ss:$9 sm:$0xff] %v1476
    %1756 = vst [vmem:[%s1605] ss:$9 sm:$0xff] %v1477
    %1757 = vst [vmem:[%s1607] ss:$9 sm:$0xff] %v1478
    %1758 = vst [vmem:[%s1609] ss:$9 sm:$0xff] %v1479
    %1759 = vst [vmem:[%s1611] ss:$9 sm:$0xff] %v1480
    %1760 = vst [vmem:[%s1613] ss:$9 sm:$0xff] %v1481
    %1761 = vst [vmem:[%s1615] ss:$9 sm:$0xff] %v1482
    %1762 = vst [vmem:[%s1617] ss:$9 sm:$0xff] %v1483
    %v1763 = vld [vmem:[#allocation1] sm:$0xff]
    %1764 = vst [vmem:[#allocation1] ss:$9 sm:$0xff] %v1484
    %1765 = vst [vmem:[%s1605] ss:$9 sm:$0xff] %v1485
    %1766 = vst [vmem:[%s1607] ss:$9 sm:$0xff] %v1486
    %1767 = vst [vmem:[%s1609] ss:$9 sm:$0xff] %v1487
    %1768 = vst [vmem:[%s1611] ss:$9 sm:$0xff] %v1488
    %1769 = vst [vmem:[%s1613] ss:$9 sm:$0xff] %v1489
    %1770 = vst [vmem:[%s1615] ss:$9 sm:$0xff] %v1490
    %1771 = vst [vmem:[%s1617] ss:$9 sm:$0xff] %v1491
    %v1772 = vld [vmem:[#allocation1] sm:$0xff]
    %1773 = vst [vmem:[#allocation1] ss:$9 sm:$0xff] %v1492
    %1774 = vst [vmem:[%s1605] ss:$9 sm:$0xff] %v1493
    %1775 = vst [vmem:[%s1607] ss:$9 sm:$0xff] %v1494
    %1776 = vst [vmem:[%s1609] ss:$9 sm:$0xff] %v1495
    %1777 = vst [vmem:[%s1611] ss:$9 sm:$0xff] %v1496
    %1778 = vst [vmem:[%s1613] ss:$9 sm:$0xff] %v1497
    %1779 = vst [vmem:[%s1615] ss:$9 sm:$0xff] %v1498
    %1780 = vst [vmem:[%s1617] ss:$9 sm:$0xff] %v1499
    %v1781 = vld [vmem:[#allocation1] sm:$0xff]
    %1782 = vst [vmem:[#allocation1] ss:$9 sm:$0xff] %v1500
    %1783 = vst [vmem:[%s1605] ss:$9 sm:$0xff] %v1501
    %1784 = vst [vmem:[%s1607] ss:$9 sm:$0xff] %v1502
    %1785 = vst [vmem:[%s1609] ss:$9 sm:$0xff] %v1503
    %1786 = vst [vmem:[%s1611] ss:$9 sm:$0xff] %v1504
    %1787 = vst [vmem:[%s1613] ss:$9 sm:$0xff] %v1505
    %1788 = vst [vmem:[%s1615] ss:$9 sm:$0xff] %v1506
    %1789 = vst [vmem:[%s1617] ss:$9 sm:$0xff] %v1507
    %v1790 = vld [vmem:[#allocation1] sm:$0xff]
    %1791 = vst [vmem:[#allocation1] ss:$9 sm:$0xff] %v1508
    %1792 = vst [vmem:[%s1605] ss:$9 sm:$0xff] %v1509
    %1793 = vst [vmem:[%s1607] ss:$9 sm:$0xff] %v1510
    %1794 = vst [vmem:[%s1609] ss:$9 sm:$0xff] %v1511
    %1795 = vst [vmem:[%s1611] ss:$9 sm:$0xff] %v1512
    %1796 = vst [vmem:[%s1613] ss:$9 sm:$0xff] %v1513
    %1797 = vst [vmem:[%s1615] ss:$9 sm:$0xff] %v1514
    %1798 = vst [vmem:[%s1617] ss:$9 sm:$0xff] %v1515
    %v1799 = vld [vmem:[#allocation1] sm:$0xff]
    %1800 = vst [vmem:[#allocation1] ss:$9 sm:$0xff] %v1516
    %1801 = vst [vmem:[%s1605] ss:$9 sm:$0xff] %v1517
    %1802 = vst [vmem:[%s1607] ss:$9 sm:$0xff] %v1518
    %1803 = vst [vmem:[%s1609] ss:$9 sm:$0xff] %v1519
    %1804 = vst [vmem:[%s1611] ss:$9 sm:$0xff] %v1520
    %1805 = vst [vmem:[%s1613] ss:$9 sm:$0xff] %v1521
    %1806 = vst [vmem:[%s1615] ss:$9 sm:$0xff] %v1522
    %1807 = vst [vmem:[%s1617] ss:$9 sm:$0xff] %v1523
    %v1808 = vld [vmem:[#allocation1] sm:$0xff]
    %1809 = vst [vmem:[#allocation1] ss:$9 sm:$0xff] %v1524
    %1810 = vst [vmem:[%s1605] ss:$9 sm:$0xff] %v1525
    %1811 = vst [vmem:[%s1607] ss:$9 sm:$0xff] %v1526
    %1812 = vst [vmem:[%s1609] ss:$9 sm:$0xff] %v1527
    %1813 = vst [vmem:[%s1611] ss:$9 sm:$0xff] %v1528
    %1814 = vst [vmem:[%s1613] ss:$9 sm:$0xff] %v1529
    %1815 = vst [vmem:[%s1615] ss:$9 sm:$0xff] %v1530
    %1816 = vst [vmem:[%s1617] ss:$9 sm:$0xff] %v1531
    %v1817 = vld [vmem:[#allocation1] sm:$0xff]
    %1818 = vst [vmem:[#allocation1] ss:$9 sm:$0xff] %v1532
    %1819 = vst [vmem:[%s1605] ss:$9 sm:$0xff] %v1533
    %1820 = vst [vmem:[%s1607] ss:$9 sm:$0xff] %v1534
    %1821 = vst [vmem:[%s1609] ss:$9 sm:$0xff] %v1535
    %1822 = vst [vmem:[%s1611] ss:$9 sm:$0xff] %v1536
    %1823 = vst [vmem:[%s1613] ss:$9 sm:$0xff] %v1537
    %1824 = vst [vmem:[%s1615] ss:$9 sm:$0xff] %v1538
    %1825 = vst [vmem:[%s1617] ss:$9 sm:$0xff] %v1539
    %v1826 = vld [vmem:[#allocation1] sm:$0xff]
    %1827 = vst [vmem:[#allocation1] ss:$9 sm:$0xff] %v1540
    %1828 = vst [vmem:[%s1605] ss:$9 sm:$0xff] %v1541
    %1829 = vst [vmem:[%s1607] ss:$9 sm:$0xff] %v1542
    %1830 = vst [vmem:[%s1609] ss:$9 sm:$0xff] %v1543
    %1831 = vst [vmem:[%s1611] ss:$9 sm:$0xff] %v1544
    %1832 = vst [vmem:[%s1613] ss:$9 sm:$0xff] %v1545
    %1833 = vst [vmem:[%s1615] ss:$9 sm:$0xff] %v1546
    %1834 = vst [vmem:[%s1617] ss:$9 sm:$0xff] %v1547
    %v1835 = vld [vmem:[#allocation1] sm:$0xff]
    %1836 = vst [vmem:[#allocation1] ss:$9 sm:$0xff] %v1548
    %1837 = vst [vmem:[%s1605] ss:$9 sm:$0xff] %v1549
    %1838 = vst [vmem:[%s1607] ss:$9 sm:$0xff] %v1550
    %1839 = vst [vmem:[%s1609] ss:$9 sm:$0xff] %v1551
    %1840 = vst [vmem:[%s1611] ss:$9 sm:$0xff] %v1552
    %1841 = vst [vmem:[%s1613] ss:$9 sm:$0xff] %v1553
    %1842 = vst [vmem:[%s1615] ss:$9 sm:$0xff] %v1554
    %1843 = vst [vmem:[%s1617] ss:$9 sm:$0xff] %v1555
    %v1844 = vld [vmem:[#allocation1] sm:$0xff]
    %1845 = vst [vmem:[#allocation1] ss:$9 sm:$0xff] %v1556
    %1846 = vst [vmem:[%s1605] ss:$9 sm:$0xff] %v1557
    %1847 = vst [vmem:[%s1607] ss:$9 sm:$0xff] %v1558
    %1848 = vst [vmem:[%s1609] ss:$9 sm:$0xff] %v1559
    %1849 = vst [vmem:[%s1611] ss:$9 sm:$0xff] %v1560
    %1850 = vst [vmem:[%s1613] ss:$9 sm:$0xff] %v1561
    %1851 = vst [vmem:[%s1615] ss:$9 sm:$0xff] %v1562
    %1852 = vst [vmem:[%s1617] ss:$9 sm:$0xff] %v1563
    %v1853 = vld [vmem:[#allocation1] sm:$0xff]
    %1854 = vst [vmem:[#allocation1] ss:$9 sm:$0xff] %v1564
    %1855 = vst [vmem:[%s1605] ss:$9 sm:$0xff] %v1565
    %1856 = vst [vmem:[%s1607] ss:$9 sm:$0xff] %v1566
    %1857 = vst [vmem:[%s1609] ss:$9 sm:$0xff] %v1567
    %1858 = vst [vmem:[%s1611] ss:$9 sm:$0xff] %v1568
    %1859 = vst [vmem:[%s1613] ss:$9 sm:$0xff] %v1569
    %1860 = vst [vmem:[%s1615] ss:$9 sm:$0xff] %v1570
    %1861 = vst [vmem:[%s1617] ss:$9 sm:$0xff] %v1571
    %v1862 = vld [vmem:[#allocation1] sm:$0xff]
    %1863 = vst [vmem:[#allocation1] ss:$9 sm:$0xff] %v1572
    %1864 = vst [vmem:[%s1605] ss:$9 sm:$0xff] %v1573
    %1865 = vst [vmem:[%s1607] ss:$9 sm:$0xff] %v1574
    %1866 = vst [vmem:[%s1609] ss:$9 sm:$0xff] %v1575
    %1867 = vst [vmem:[%s1611] ss:$9 sm:$0xff] %v1576
    %1868 = vst [vmem:[%s1613] ss:$9 sm:$0xff] %v1577
    %1869 = vst [vmem:[%s1615] ss:$9 sm:$0xff] %v1578
    %1870 = vst [vmem:[%s1617] ss:$9 sm:$0xff] %v1579
    %v1871 = vld [vmem:[#allocation1] sm:$0xff]
    %1872 = vst [vmem:[#allocation1] ss:$9 sm:$0xff] %v1580
    %1873 = vst [vmem:[%s1605] ss:$9 sm:$0xff] %v1581
    %1874 = vst [vmem:[%s1607] ss:$9 sm:$0xff] %v1582
    %1875 = vst [vmem:[%s1609] ss:$9 sm:$0xff] %v1583
    %1876 = vst [vmem:[%s1611] ss:$9 sm:$0xff] %v1584
    %1877 = vst [vmem:[%s1613] ss:$9 sm:$0xff] %v1585
    %1878 = vst [vmem:[%s1615] ss:$9 sm:$0xff] %v1586
    %1879 = vst [vmem:[%s1617] ss:$9 sm:$0xff] %v1587
    %v1880 = vld [vmem:[#allocation1] sm:$0xff]
    %1881 = vst [vmem:[#allocation1] ss:$9 sm:$0xff] %v1588
    %1882 = vst [vmem:[%s1605] ss:$9 sm:$0xff] %v1589
    %1883 = vst [vmem:[%s1607] ss:$9 sm:$0xff] %v1590
    %1884 = vst [vmem:[%s1609] ss:$9 sm:$0xff] %v1591
    %1885 = vst [vmem:[%s1611] ss:$9 sm:$0xff] %v1592
    %1886 = vst [vmem:[%s1613] ss:$9 sm:$0xff] %v1593
    %1887 = vst [vmem:[%s1615] ss:$9 sm:$0xff] %v1594
    %1888 = vst [vmem:[%s1617] ss:$9 sm:$0xff] %v1595
    %v1889 = vld [vmem:[#allocation1] sm:$0xff]
    %1890 = vst [vmem:[#allocation1] ss:$9 sm:$0xff] %v1596
    %1891 = vst [vmem:[%s1605] ss:$9 sm:$0xff] %v1597
    %1892 = vst [vmem:[%s1607] ss:$9 sm:$0xff] %v1598
    %1893 = vst [vmem:[%s1609] ss:$9 sm:$0xff] %v1599
    %1894 = vst [vmem:[%s1611] ss:$9 sm:$0xff] %v1600
    %1895 = vst [vmem:[%s1613] ss:$9 sm:$0xff] %v1601
    %1896 = vst [vmem:[%s1615] ss:$9 sm:$0xff] %v1602
    %1897 = vst [vmem:[%s1617] ss:$9 sm:$0xff] %v1603
    %v1898 = vld [vmem:[#allocation1] sm:$0xff]
    %1899 = vset.pattern.permute.xlu0 0
    %1900 = vperm.xlu0 %1899, %v1619
    %v1901 = vpop.permute.xlu0 %1900
    %1902 = vset.pattern.permute.xlu0 0
    %1903 = vperm.xlu0 %1902, %v1628
    %v1904 = vpop.permute.xlu0 %1903
    %1905 = vset.pattern.permute.xlu0 0
    %1906 = vperm.xlu0 %1905, %v1637
    %v1907 = vpop.permute.xlu0 %1906
    %1908 = vset.pattern.permute.xlu0 0
    %1909 = vperm.xlu0 %1908, %v1646
    %v1910 = vpop.permute.xlu0 %1909
    %1911 = vset.pattern.permute.xlu0 0
    %1912 = vperm.xlu0 %1911, %v1655
    %v1913 = vpop.permute.xlu0 %1912
    %1914 = vset.pattern.permute.xlu0 0
    %1915 = vperm.xlu0 %1914, %v1664
    %v1916 = vpop.permute.xlu0 %1915
    %1917 = vset.pattern.permute.xlu0 0
    %1918 = vperm.xlu0 %1917, %v1673
    %v1919 = vpop.permute.xlu0 %1918
    %1920 = vset.pattern.permute.xlu0 0
    %1921 = vperm.xlu0 %1920, %v1682
    %v1922 = vpop.permute.xlu0 %1921
    %1923 = vset.pattern.permute.xlu0 0
    %1924 = vperm.xlu0 %1923, %v1691
    %v1925 = vpop.permute.xlu0 %1924
    %1926 = vset.pattern.permute.xlu0 0
    %1927 = vperm.xlu0 %1926, %v1700
    %v1928 = vpop.permute.xlu0 %1927
    %1929 = vset.pattern.permute.xlu0 0
    %1930 = vperm.xlu0 %1929, %v1709
    %v1931 = vpop.permute.xlu0 %1930
    %1932 = vset.pattern.permute.xlu0 0
    %1933 = vperm.xlu0 %1932, %v1718
    %v1934 = vpop.permute.xlu0 %1933
    %1935 = vset.pattern.permute.xlu0 0
    %1936 = vperm.xlu0 %1935, %v1727
    %v1937 = vpop.permute.xlu0 %1936
    %1938 = vset.pattern.permute.xlu0 0
    %1939 = vperm.xlu0 %1938, %v1736
    %v1940 = vpop.permute.xlu0 %1939
    %1941 = vset.pattern.permute.xlu0 0
    %1942 = vperm.xlu0 %1941, %v1745
    %v1943 = vpop.permute.xlu0 %1942
    %1944 = vset.pattern.permute.xlu0 0
    %1945 = vperm.xlu0 %1944, %v1754
    %v1946 = vpop.permute.xlu0 %1945
    %1947 = vset.pattern.permute.xlu0 0
    %1948 = vperm.xlu0 %1947, %v1763
    %v1949 = vpop.permute.xlu0 %1948
    %1950 = vset.pattern.permute.xlu0 0
    %1951 = vperm.xlu0 %1950, %v1772
    %v1952 = vpop.permute.xlu0 %1951
    %1953 = vset.pattern.permute.xlu0 0
    %1954 = vperm.xlu0 %1953, %v1781
    %v1955 = vpop.permute.xlu0 %1954
    %1956 = vset.pattern.permute.xlu0 0
    %1957 = vperm.xlu0 %1956, %v1790
    %v1958 = vpop.permute.xlu0 %1957
    %1959 = vset.pattern.permute.xlu0 0
    %1960 = vperm.xlu0 %1959, %v1799
    %v1961 = vpop.permute.xlu0 %1960
    %1962 = vset.pattern.permute.xlu0 0
    %1963 = vperm.xlu0 %1962, %v1808
    %v1964 = vpop.permute.xlu0 %1963
    %1965 = vset.pattern.permute.xlu0 0
    %1966 = vperm.xlu0 %1965, %v1817
    %v1967 = vpop.permute.xlu0 %1966
    %1968 = vset.pattern.permute.xlu0 0
    %1969 = vperm.xlu0 %1968, %v1826
    %v1970 = vpop.permute.xlu0 %1969
    %1971 = vset.pattern.permute.xlu0 0
    %1972 = vperm.xlu0 %1971, %v1835
    %v1973 = vpop.permute.xlu0 %1972
    %1974 = vset.pattern.permute.xlu0 0
    %1975 = vperm.xlu0 %1974, %v1844
    %v1976 = vpop.permute.xlu0 %1975
    %1977 = vset.pattern.permute.xlu0 0
    %1978 = vperm.xlu0 %1977, %v1853
    %v1979 = vpop.permute.xlu0 %1978
    %1980 = vset.pattern.permute.xlu0 0
    %1981 = vperm.xlu0 %1980, %v1862
    %v1982 = vpop.permute.xlu0 %1981
    %1983 = vset.pattern.permute.xlu0 0
    %1984 = vperm.xlu0 %1983, %v1871
    %v1985 = vpop.permute.xlu0 %1984
    %1986 = vset.pattern.permute.xlu0 0
    %1987 = vperm.xlu0 %1986, %v1880
    %v1988 = vpop.permute.xlu0 %1987
    %1989 = vset.pattern.permute.xlu0 0
    %1990 = vperm.xlu0 %1989, %v1889
    %v1991 = vpop.permute.xlu0 %1990
    %1992 = vset.pattern.permute.xlu0 0
    %1993 = vperm.xlu0 %1992, %v1898
    %v1994 = vpop.permute.xlu0 %1993
    %v1995 = vlaneseq
    %v1996 = vand.u32 %v1995, 127
    %v1997 = vperm.slane %v1901, %v1996
    %v1998 = vadd.s32 %v1996, 4294967288
    %v1999 = vperm.slane %v1904, %v1998
    %vm2000 = vcmask 130112
    %v2001 = vsel %vm2000, %v1999, %v1997
    %v2002 = vadd.s32 %v1996, 4294967280
    %v2003 = vperm.slane %v1907, %v2002
    %vm2004 = vcmask 195712
    %v2005 = vsel %vm2004, %v2003, %v2001
    %v2006 = vadd.s32 %v1996, 4294967272
    %v2007 = vperm.slane %v1910, %v2006
    %vm2008 = vcmask 261312
    %v2009 = vsel %vm2008, %v2007, %v2005
    %v2010 = vadd.s32 %v1996, 4294967264
    %v2011 = vperm.slane %v1913, %v2010
    %vm2012 = vcmask 326912
    %v2013 = vsel %vm2012, %v2011, %v2009
    %v2014 = vadd.s32 %v1996, 4294967256
    %v2015 = vperm.slane %v1916, %v2014
    %vm2016 = vcmask 392512
    %v2017 = vsel %vm2016, %v2015, %v2013
    %v2018 = vadd.s32 %v1996, 4294967248
    %v2019 = vperm.slane %v1919, %v2018
    %vm2020 = vcmask 458112
    %v2021 = vsel %vm2020, %v2019, %v2017
    %v2022 = vadd.s32 %v1996, 4294967240
    %v2023 = vperm.slane %v1922, %v2022
    %vm2024 = vcmask 523712
    %v2025 = vsel %vm2024, %v2023, %v2021
    %v2026 = vadd.s32 %v1996, 4294967232
    %v2027 = vperm.slane %v1925, %v2026
    %vm2028 = vcmask 589312
    %v2029 = vsel %vm2028, %v2027, %v2025
    %v2030 = vadd.s32 %v1996, 4294967224
    %v2031 = vperm.slane %v1928, %v2030
    %vm2032 = vcmask 654912
    %v2033 = vsel %vm2032, %v2031, %v2029
    %v2034 = vadd.s32 %v1996, 4294967216
    %v2035 = vperm.slane %v1931, %v2034
    %vm2036 = vcmask 720512
    %v2037 = vsel %vm2036, %v2035, %v2033
    %v2038 = vadd.s32 %v1996, 4294967208
    %v2039 = vperm.slane %v1934, %v2038
    %vm2040 = vcmask 786112
    %v2041 = vsel %vm2040, %v2039, %v2037
    %v2042 = vadd.s32 %v1996, 4294967200
    %v2043 = vperm.slane %v1937, %v2042
    %vm2044 = vcmask 851712
    %v2045 = vsel %vm2044, %v2043, %v2041
    %v2046 = vadd.s32 %v1996, 4294967192
    %v2047 = vperm.slane %v1940, %v2046
    %vm2048 = vcmask 917312
    %v2049 = vsel %vm2048, %v2047, %v2045
    %v2050 = vadd.s32 %v1996, 4294967184
    %v2051 = vperm.slane %v1943, %v2050
    %vm2052 = vcmask 982912
    %v2053 = vsel %vm2052, %v2051, %v2049
    %v2054 = vadd.s32 %v1996, 4294967176
    %v2055 = vperm.slane %v1946, %v2054
    %vm2056 = vcmask 1048512
    %v2057 = vsel %vm2056, %v2055, %v2053
    %v2058 = vperm.slane %v1949, %v1996
    %v2059 = vperm.slane %v1952, %v1998
    %v2060 = vsel %vm2000, %v2059, %v2058
    %v2061 = vperm.slane %v1955, %v2002
    %v2062 = vsel %vm2004, %v2061, %v2060
    %v2063 = vperm.slane %v1958, %v2006
    %v2064 = vsel %vm2008, %v2063, %v2062
    %v2065 = vperm.slane %v1961, %v2010
    %v2066 = vsel %vm2012, %v2065, %v2064
    %v2067 = vperm.slane %v1964, %v2014
    %v2068 = vsel %vm2016, %v2067, %v2066
    %v2069 = vperm.slane %v1967, %v2018
    %v2070 = vsel %vm2020, %v2069, %v2068
    %v2071 = vperm.slane %v1970, %v2022
    %v2072 = vsel %vm2024, %v2071, %v2070
    %v2073 = vperm.slane %v1973, %v2026
    %v2074 = vsel %vm2028, %v2073, %v2072
    %v2075 = vperm.slane %v1976, %v2030
    %v2076 = vsel %vm2032, %v2075, %v2074
    %v2077 = vperm.slane %v1979, %v2034
    %v2078 = vsel %vm2036, %v2077, %v2076
    %v2079 = vperm.slane %v1982, %v2038
    %v2080 = vsel %vm2040, %v2079, %v2078
    %v2081 = vperm.slane %v1985, %v2042
    %v2082 = vsel %vm2044, %v2081, %v2080
    %v2083 = vperm.slane %v1988, %v2046
    %v2084 = vsel %vm2048, %v2083, %v2082
    %v2085 = vperm.slane %v1991, %v2050
    %v2086 = vsel %vm2052, %v2085, %v2084
    %v2087 = vperm.slane %v1994, %v2054
    %v2088 = vsel %vm2056, %v2087, %v2086
    %v2089 = vrot.slane %v2088, 7
    %vm2090 = vcmask 1040384
    %v2091 = vsel %vm2090, %v2057, %v2089
    %v2093 = vlaneseq
    %vm2094 = vcmp.ge.s32.totalorder %v2093, 0
    %vm2095 = vcmp.lt.s32.totalorder %v2093, 256
    %vm2096 = vmand %vm2094, %vm2095
    %2097 = vst.msk [vmem:[#allocation5] sm:$0x3] %vm2096, %v2091
    // Predicated region
    $region22: #{tpu_custom_call.1} parent=1 // pred_check
      _
    $region23: #{tpu_custom_call.1} parent=1 // pred_check_branch
      %2099 = sbr.rel (0) target = $region25
    $region24: #{tpu_custom_call.1} parent=1 // pred_region
      %2101 = vsyncadd [#allocation4], 0
      %s2103 = sshll.u32 [#allocation5], 4
      %s2104 = int_to_ptr.vmem [resolvable:$true] %s2103
      %s2105 = sshll.u32 %s4, 4
      %s2106 = int_to_ptr.hbm [resolvable:$true] %s2105
      %2108 = dma.vmem_to_hbm [thread:$0]  %s2104, 32, %s2106, [#allocation4]
    $region25: #{tpu_custom_call.1} parent=1 // pred_fallthru
      _
    // Predicated region
    $region26: #{tpu_custom_call.1} parent=1 // pred_check
      _
    $region27: #{tpu_custom_call.1} parent=1 // pred_check_branch
      %2110 = sbr.rel (0) target = $region29
    $region28: #{tpu_custom_call.1} parent=1 // pred_region
      %2112 = dma.done [#allocation4], 32
    $region29: #{tpu_custom_call.1} parent=1 // pred_fallthru
      _
    %2113 = vsyncpa [#allocation3], 1
    %2114 = vsyncpa [#allocation4], 1

</llo_original>
